<compile_context>
chip_gen: v7x
topology: tpu7x:2x2x1
jax: 0.10.0
libtpu: 0.0.40
codegen_flags: <defaults>
</compile_context>

<pallas_src>
import functools

import jax
import jax.numpy as jnp
from jax.experimental import pallas as pl
from jax.experimental.pallas import tpu as pltpu


def _round_up(x, m):
    return ((x + m - 1) // m) * m


def _nbrc_chunk_kernel(ia_ref, ic_ref, io_ref, h0_ref, wm_ref, hseq_ref, h_scr,
                       *, mem_sz, t_chunk):
    """Runs `t_chunk` recurrence steps per sequential grid iteration.

    ia_ref/ic_ref/io_ref: (B, t_chunk, M)  precomputed, lane-aligned gate inputs
    h0_ref:               (B, M)           initial hidden state (constant block)
    wm_ref:               (M, 2M)          fused recurrent weight w_mm.T
    hseq_ref:             (B, t_chunk, M)  output hidden states for this chunk
    h_scr:                (B, M) float32   hidden state carried across chunks
    """
    M = mem_sz

    # Initialize the carried hidden state at the first chunk.
    @pl.when(pl.program_id(0) == 0)
    def _():
        h_scr[...] = h0_ref[...].astype(jnp.float32)

    h = h_scr[...]                 # (B, M) f32 — lives in vregs within the chunk
    w_m = wm_ref[...]              # (M, 2M) hoisted weight load (reused every step)
    dot_dtype = w_m.dtype

    # Statically unrolled time loop: every ref access uses compile-time offsets
    # into the resident VMEM blocks (no per-step DMA).
    for i in range(t_chunk):
        i_a = ia_ref[:, i, :].astype(jnp.float32)      # whole lane-aligned tiles
        i_c = ic_ref[:, i, :].astype(jnp.float32)
        i_o = io_ref[:, i, :].astype(jnp.float32)

        # Single fused h-dependent projection: one MXU push per step.
        m = jnp.dot(h.astype(dot_dtype), w_m,
                    preferred_element_type=jnp.float32)  # (B, 2M) f32
        m_a = m[:, :M]
        m_c = m[:, M:]

        a = 1.0 + jnp.tanh(i_a + m_a)
        c = jax.nn.sigmoid(i_c + m_c)
        h = c * h + (1.0 - c) * jnp.tanh(i_o + a * h)

        hseq_ref[:, i, :] = h.astype(hseq_ref.dtype)

    h_scr[...] = h                 # spill carried state only at the chunk boundary


def nbrc_forward(u, w_im, w_mm, h0=None, *, t_chunk=16, dot_dtype=jnp.bfloat16):
    """nBRC forward pass.

    Args:
      u:    (B, L, in_sz) float32 (batch_first)
      w_im: (3*M, in_sz)  float32  -- nn.Linear(in_sz, 3*M, bias=False).weight
      w_mm: (2*M, M)      float32  -- nn.Linear(M, 2*M,  bias=False).weight
      h0:   optional (B, M); defaults to zeros.
      t_chunk:   time steps per sequential grid iteration (rounded to mult of 8).
      dot_dtype: storage dtype of the hoisted gate streams and operand dtype of
                 the recurrent dot (bf16 default; accumulation/elementwise f32).

    Returns:
      (h_seq, h_last) with h_seq: (B, L, M), h_last: (B, 1, M)
      (matches torch: (cat(h_t, dim=1), h_t[-1]))
    """
    B, L, in_sz = u.shape
    M = w_mm.shape[1]
    out_dtype = u.dtype

    if h0 is None:
        h0 = jnp.zeros((B, M), dtype=out_dtype)

    # Hoisted input projection: one big matmul outside the sequential recurrence,
    # then split into three lane-aligned (B, L, M) streams (stored in dot_dtype
    # to halve the HBM traffic of the per-chunk input DMA when bf16).
    u_proj = jnp.einsum('blk,mk->blm', u, w_im)              # (B, L, 3M) f32
    ia = u_proj[:, :, :M].astype(dot_dtype)
    ic = u_proj[:, :, M:2 * M].astype(dot_dtype)
    io = u_proj[:, :, 2 * M:].astype(dot_dtype)

    # Fused, pre-transposed recurrent weight (single (M, 2M) dot per step).
    w_m = jnp.asarray(w_mm.T, dtype=dot_dtype)               # (M, 2M)

    # Chunk the time axis: t_chunk a multiple of 8 (sublane tiling), clamped so a
    # short sequence does not pay for wasted padded steps.
    t_chunk = min(_round_up(t_chunk, 8), _round_up(L, 8))
    n_chunks = -(-L // t_chunk)
    L_pad = n_chunks * t_chunk
    if L_pad != L:
        # Padded (zero-input) tail steps run real recurrence updates but their
        # outputs are sliced away below; only h_seq[:, L-1] is the true h_L.
        pad = ((0, 0), (0, L_pad - L), (0, 0))
        ia = jnp.pad(ia, pad)
        ic = jnp.pad(ic, pad)
        io = jnp.pad(io, pad)

    grid_spec = pltpu.PrefetchScalarGridSpec(
        num_scalar_prefetch=0,
        grid=(n_chunks,),
        in_specs=[
            pl.BlockSpec((B, t_chunk, M), lambda c: (0, c, 0)),   # i_a chunk
            pl.BlockSpec((B, t_chunk, M), lambda c: (0, c, 0)),   # i_c chunk
            pl.BlockSpec((B, t_chunk, M), lambda c: (0, c, 0)),   # i_o chunk
            # Constant-index blocks (DMA'd once). At realistic M, add
            # pipeline_mode=pl.Buffered(1) to avoid double-buffering them.
            pl.BlockSpec((B, M), lambda c: (0, 0)),               # h0
            pl.BlockSpec((M, 2 * M), lambda c: (0, 0)),           # fused w_mm.T
        ],
        out_specs=pl.BlockSpec((B, t_chunk, M), lambda c: (0, c, 0)),
        scratch_shapes=[pltpu.VMEM((B, M), jnp.float32)],         # carried h
    )

    h_seq_pad = pl.pallas_call(
        functools.partial(_nbrc_chunk_kernel, mem_sz=M, t_chunk=t_chunk),
        out_shape=jax.ShapeDtypeStruct((B, L_pad, M), out_dtype),
        grid_spec=grid_spec,
        compiler_params=pltpu.CompilerParams(
            dimension_semantics=("arbitrary",),     # recurrence -> sequential grid
            vmem_limit_bytes=32 * 1024 * 1024,       # explicit scoped-VMEM budget
        ),
    )(ia, ic, io, h0, w_m)

    h_seq = h_seq_pad[:, :L, :]
    h_last = h_seq[:, L - 1:L, :]
    return h_seq, h_last


def nbrc_reference(u, w_im, w_mm, h0=None):
    """Pure-JAX f32 reference mirroring the PyTorch forward."""
    B, L, in_sz = u.shape
    M = w_mm.shape[1]
    if h0 is None:
        h0 = jnp.zeros((B, M), dtype=u.dtype)

    def step(h, x):
        in_emb = x @ w_im.T
        i_a, i_c, i_o = in_emb[:, :M], in_emb[:, M:2 * M], in_emb[:, 2 * M:]
        mem_emb = h @ w_mm.T
        m_a, m_c = mem_emb[:, :M], mem_emb[:, M:]
        a = 1.0 + jnp.tanh(i_a + m_a)
        c = jax.nn.sigmoid(i_c + m_c)
        h_new = c * h + (1.0 - c) * jnp.tanh(i_o + a * h)
        return h_new, h_new

    h_final, h_seq = jax.lax.scan(step, h0, jnp.transpose(u, (1, 0, 2)))
    return jnp.transpose(h_seq, (1, 0, 2)), h_final[:, None, :]


if __name__ == "__main__":
    # Small, deterministic problem: B=2, L=8, in_sz=4, mem_sz=32.
    B, L, IN, M = 2, 8, 4, 32
    key = jax.random.PRNGKey(0)
    k_u, k_im, k_mm = jax.random.split(key, 3)

    u = jax.random.normal(k_u, (B, L, IN), dtype=jnp.float32)
    # Deterministic "Linear" weights (bias=False), PyTorch-style uniform range.
    bound_im = 1.0 / (IN ** 0.5)
    bound_mm = 1.0 / (M ** 0.5)
    w_im = jax.random.uniform(k_im, (3 * M, IN), minval=-bound_im, maxval=bound_im,
                              dtype=jnp.float32)
    w_mm = jax.random.uniform(k_mm, (2 * M, M), minval=-bound_mm, maxval=bound_mm,
                              dtype=jnp.float32)

    h_seq_ref, h_last_ref = nbrc_reference(u, w_im, w_mm)

    # 1) f32-operand path: exact-structure check against the f32 reference.
    fwd_f32 = jax.jit(functools.partial(nbrc_forward, dot_dtype=jnp.float32))
    h_seq, h_last = jax.block_until_ready(fwd_f32(u, w_im, w_mm))
    assert h_seq.shape == (B, L, M)
    assert h_last.shape == (B, 1, M)
    assert jnp.allclose(h_seq, h_seq_ref, rtol=1e-4, atol=1e-4)
    assert jnp.allclose(h_last, h_last_ref, rtol=1e-4, atol=1e-4)

    # 2) Default bf16-operand / bf16-stream path (MXU-native): looser tolerance,
    #    since the recurrence compounds operand-rounding error over L steps.
    fwd_bf16 = jax.jit(nbrc_forward)
    h_seq_b, h_last_b = jax.block_until_ready(fwd_bf16(u, w_im, w_mm))
    assert h_seq_b.shape == (B, L, M)
    assert h_last_b.shape == (B, 1, M)
    assert jnp.allclose(h_seq_b, h_seq_ref, rtol=5e-2, atol=5e-2)
    assert jnp.allclose(h_last_b, h_last_ref, rtol=5e-2, atol=5e-2)

    print("KERNEL_OK")
</pallas_src>

<mosaic_0001>
module attributes {stable_mosaic.version = 11 : i64} {
  func.func @_nbrc_chunk_kernel(%arg0: i32, %arg1: memref<2x8x32xf32, #tpu.memory_space<vmem>>, %arg2: memref<2x8x32xf32, #tpu.memory_space<vmem>>, %arg3: memref<2x8x32xf32, #tpu.memory_space<vmem>>, %arg4: memref<2x32xf32, #tpu.memory_space<vmem>>, %arg5: memref<32x64xf32, #tpu.memory_space<vmem>>, %arg6: memref<2x8x32xf32, #tpu.memory_space<vmem>>, %arg7: memref<2x32xf32, #tpu.memory_space<vmem>>) attributes {dimension_semantics = [#tpu.dimension_semantics<arbitrary>], iteration_bounds = array<i64: 1>, scalar_prefetch = 0 : i64, scratch_operands = 1 : i64, tpu.core_type = #tpu.core_type<tc>, window_params = [{transform_indices = @transform_0, window_bounds = array<i64: 2, 8, 32>}, {transform_indices = @transform_1, window_bounds = array<i64: 2, 8, 32>}, {transform_indices = @transform_2, window_bounds = array<i64: 2, 8, 32>}, {pipeline_mode = #tpu.pipeline_mode<synchronous>, transform_indices = @transform_3, window_bounds = array<i64: 2, 32>}, {pipeline_mode = #tpu.pipeline_mode<synchronous>, transform_indices = @transform_4, window_bounds = array<i64: 32, 64>}, {transform_indices = @transform_5, window_bounds = array<i64: 2, 8, 32>}]} {
    %c0_i32 = arith.constant 0 : i32
    %0 = arith.cmpi eq, %arg0, %c0_i32 : i32
    %1 = arith.extui %0 : i1 to i32
    %c0_i32_0 = arith.constant 0 : i32
    %2 = arith.cmpi ne, %1, %c0_i32_0 : i32
    scf.if %2 {
      %c0_126 = arith.constant 0 : index
      %c0_127 = arith.constant 0 : index
      %246 = vector.load %arg4[%c0_126, %c0_127] : memref<2x32xf32, #tpu.memory_space<vmem>>, vector<2x32xf32>
      %c0_128 = arith.constant 0 : index
      %c0_129 = arith.constant 0 : index
      %247 = vector.load %arg7[%c0_128, %c0_129] : memref<2x32xf32, #tpu.memory_space<vmem>>, vector<2x32xf32>
      tpu.vector_store %arg7[%c0_128, %c0_129], %246 {strides = array<i32>} : memref<2x32xf32, #tpu.memory_space<vmem>>, vector<2x32xf32>,
    } else {
    }
    %c0 = arith.constant 0 : index
    %c0_1 = arith.constant 0 : index
    %3 = vector.load %arg7[%c0, %c0_1] : memref<2x32xf32, #tpu.memory_space<vmem>>, vector<2x32xf32>
    %c0_2 = arith.constant 0 : index
    %c0_3 = arith.constant 0 : index
    %4 = vector.load %arg5[%c0_2, %c0_3] : memref<32x64xf32, #tpu.memory_space<vmem>>, vector<32x64xf32>
    %c0_4 = arith.constant 0 : index
    %c0_5 = arith.constant 0 : index
    %c0_6 = arith.constant 0 : index
    %5 = vector.load %arg1[%c0_4, %c0_5, %c0_6] : memref<2x8x32xf32, #tpu.memory_space<vmem>>, vector<2x1x32xf32>
    %6 = vector.shape_cast %5 : vector<2x1x32xf32> to vector<2x32xf32>
    %c0_7 = arith.constant 0 : index
    %c0_8 = arith.constant 0 : index
    %c0_9 = arith.constant 0 : index
    %7 = vector.load %arg2[%c0_7, %c0_8, %c0_9] : memref<2x8x32xf32, #tpu.memory_space<vmem>>, vector<2x1x32xf32>
    %8 = vector.shape_cast %7 : vector<2x1x32xf32> to vector<2x32xf32>
    %c0_10 = arith.constant 0 : index
    %c0_11 = arith.constant 0 : index
    %c0_12 = arith.constant 0 : index
    %9 = vector.load %arg3[%c0_10, %c0_11, %c0_12] : memref<2x8x32xf32, #tpu.memory_space<vmem>>, vector<2x1x32xf32>
    %10 = vector.shape_cast %9 : vector<2x1x32xf32> to vector<2x32xf32>
    %cst = arith.constant dense<0.000000e+00> : vector<2x64xf32>
    %11 = tpu.matmul %3, %4, %cst {dimension_numbers = #tpu.dot_dimension_numbers<[1], [0], [0], [1], [0, 0, 1, 1], [], []>} : vector<2x32xf32>, vector<32x64xf32>, vector<2x64xf32> -> vector<2x64xf32>
    %12 = vector.extract_strided_slice %11 {offsets = [0, 0], sizes = [2, 32], strides = [1, 1]} : vector<2x64xf32> to vector<2x32xf32>
    %13 = vector.extract_strided_slice %11 {offsets = [0, 32], sizes = [2, 32], strides = [1, 1]} : vector<2x64xf32> to vector<2x32xf32>
    %14 = arith.addf %6, %12 : vector<2x32xf32>
    %15 = math.tanh %14 : vector<2x32xf32>
    %cst_13 = arith.constant 1.000000e+00 : f32
    %16 = vector.broadcast %cst_13 : f32 to vector<2x32xf32>
    %17 = arith.addf %16, %15 : vector<2x32xf32>
    %18 = arith.addf %8, %13 : vector<2x32xf32>
    %19 = arith.negf %18 : vector<2x32xf32>
    %20 = math.exp %19 : vector<2x32xf32>
    %cst_14 = arith.constant 1.000000e+00 : f32
    %21 = vector.broadcast %cst_14 : f32 to vector<2x32xf32>
    %22 = arith.addf %21, %20 : vector<2x32xf32>
    %23 = arith.divf %21, %22 : vector<2x32xf32>
    %24 = arith.mulf %23, %3 : vector<2x32xf32>
    %cst_15 = arith.constant 1.000000e+00 : f32
    %25 = vector.broadcast %cst_15 : f32 to vector<2x32xf32>
    %26 = arith.subf %25, %23 : vector<2x32xf32>
    %27 = arith.mulf %17, %3 : vector<2x32xf32>
    %28 = arith.addf %10, %27 : vector<2x32xf32>
    %29 = math.tanh %28 : vector<2x32xf32>
    %30 = arith.mulf %26, %29 : vector<2x32xf32>
    %31 = arith.addf %24, %30 : vector<2x32xf32>
    %c0_16 = arith.constant 0 : index
    %c0_17 = arith.constant 0 : index
    %c0_18 = arith.constant 0 : index
    %32 = vector.load %arg6[%c0_16, %c0_17, %c0_18] : memref<2x8x32xf32, #tpu.memory_space<vmem>>, vector<2x1x32xf32>
    %33 = vector.shape_cast %32 : vector<2x1x32xf32> to vector<2x32xf32>
    %34 = vector.shape_cast %31 : vector<2x32xf32> to vector<2x1x32xf32>
    tpu.vector_store %arg6[%c0_16, %c0_17, %c0_18], %34 {strides = array<i32>} : memref<2x8x32xf32, #tpu.memory_space<vmem>>, vector<2x1x32xf32>,
    %c0_19 = arith.constant 0 : index
    %c1 = arith.constant 1 : index
    %c0_20 = arith.constant 0 : index
    %35 = vector.load %arg1[%c0_19, %c1, %c0_20] : memref<2x8x32xf32, #tpu.memory_space<vmem>>, vector<2x1x32xf32>
    %36 = vector.shape_cast %35 : vector<2x1x32xf32> to vector<2x32xf32>
    %c0_21 = arith.constant 0 : index
    %c1_22 = arith.constant 1 : index
    %c0_23 = arith.constant 0 : index
    %37 = vector.load %arg2[%c0_21, %c1_22, %c0_23] : memref<2x8x32xf32, #tpu.memory_space<vmem>>, vector<2x1x32xf32>
    %38 = vector.shape_cast %37 : vector<2x1x32xf32> to vector<2x32xf32>
    %c0_24 = arith.constant 0 : index
    %c1_25 = arith.constant 1 : index
    %c0_26 = arith.constant 0 : index
    %39 = vector.load %arg3[%c0_24, %c1_25, %c0_26] : memref<2x8x32xf32, #tpu.memory_space<vmem>>, vector<2x1x32xf32>
    %40 = vector.shape_cast %39 : vector<2x1x32xf32> to vector<2x32xf32>
    %cst_27 = arith.constant dense<0.000000e+00> : vector<2x64xf32>
    %41 = tpu.matmul %31, %4, %cst_27 {dimension_numbers = #tpu.dot_dimension_numbers<[1], [0], [0], [1], [0, 0, 1, 1], [], []>} : vector<2x32xf32>, vector<32x64xf32>, vector<2x64xf32> -> vector<2x64xf32>
    %42 = vector.extract_strided_slice %41 {offsets = [0, 0], sizes = [2, 32], strides = [1, 1]} : vector<2x64xf32> to vector<2x32xf32>
    %43 = vector.extract_strided_slice %41 {offsets = [0, 32], sizes = [2, 32], strides = [1, 1]} : vector<2x64xf32> to vector<2x32xf32>
    %44 = arith.addf %36, %42 : vector<2x32xf32>
    %45 = math.tanh %44 : vector<2x32xf32>
    %cst_28 = arith.constant 1.000000e+00 : f32
    %46 = vector.broadcast %cst_28 : f32 to vector<2x32xf32>
    %47 = arith.addf %46, %45 : vector<2x32xf32>
    %48 = arith.addf %38, %43 : vector<2x32xf32>
    %49 = arith.negf %48 : vector<2x32xf32>
    %50 = math.exp %49 : vector<2x32xf32>
    %cst_29 = arith.constant 1.000000e+00 : f32
    %51 = vector.broadcast %cst_29 : f32 to vector<2x32xf32>
    %52 = arith.addf %51, %50 : vector<2x32xf32>
    %53 = arith.divf %51, %52 : vector<2x32xf32>
    %54 = arith.mulf %53, %31 : vector<2x32xf32>
    %cst_30 = arith.constant 1.000000e+00 : f32
    %55 = vector.broadcast %cst_30 : f32 to vector<2x32xf32>
    %56 = arith.subf %55, %53 : vector<2x32xf32>
    %57 = arith.mulf %47, %31 : vector<2x32xf32>
    %58 = arith.addf %40, %57 : vector<2x32xf32>
    %59 = math.tanh %58 : vector<2x32xf32>
    %60 = arith.mulf %56, %59 : vector<2x32xf32>
    %61 = arith.addf %54, %60 : vector<2x32xf32>
    %c0_31 = arith.constant 0 : index
    %c1_32 = arith.constant 1 : index
    %c0_33 = arith.constant 0 : index
    %62 = vector.load %arg6[%c0_31, %c1_32, %c0_33] : memref<2x8x32xf32, #tpu.memory_space<vmem>>, vector<2x1x32xf32>
    %63 = vector.shape_cast %62 : vector<2x1x32xf32> to vector<2x32xf32>
    %64 = vector.shape_cast %61 : vector<2x32xf32> to vector<2x1x32xf32>
    tpu.vector_store %arg6[%c0_31, %c1_32, %c0_33], %64 {strides = array<i32>} : memref<2x8x32xf32, #tpu.memory_space<vmem>>, vector<2x1x32xf32>,
    %c0_34 = arith.constant 0 : index
    %c2 = arith.constant 2 : index
    %c0_35 = arith.constant 0 : index
    %65 = vector.load %arg1[%c0_34, %c2, %c0_35] : memref<2x8x32xf32, #tpu.memory_space<vmem>>, vector<2x1x32xf32>
    %66 = vector.shape_cast %65 : vector<2x1x32xf32> to vector<2x32xf32>
    %c0_36 = arith.constant 0 : index
    %c2_37 = arith.constant 2 : index
    %c0_38 = arith.constant 0 : index
    %67 = vector.load %arg2[%c0_36, %c2_37, %c0_38] : memref<2x8x32xf32, #tpu.memory_space<vmem>>, vector<2x1x32xf32>
    %68 = vector.shape_cast %67 : vector<2x1x32xf32> to vector<2x32xf32>
    %c0_39 = arith.constant 0 : index
    %c2_40 = arith.constant 2 : index
    %c0_41 = arith.constant 0 : index
    %69 = vector.load %arg3[%c0_39, %c2_40, %c0_41] : memref<2x8x32xf32, #tpu.memory_space<vmem>>, vector<2x1x32xf32>
    %70 = vector.shape_cast %69 : vector<2x1x32xf32> to vector<2x32xf32>
    %cst_42 = arith.constant dense<0.000000e+00> : vector<2x64xf32>
    %71 = tpu.matmul %61, %4, %cst_42 {dimension_numbers = #tpu.dot_dimension_numbers<[1], [0], [0], [1], [0, 0, 1, 1], [], []>} : vector<2x32xf32>, vector<32x64xf32>, vector<2x64xf32> -> vector<2x64xf32>
    %72 = vector.extract_strided_slice %71 {offsets = [0, 0], sizes = [2, 32], strides = [1, 1]} : vector<2x64xf32> to vector<2x32xf32>
    %73 = vector.extract_strided_slice %71 {offsets = [0, 32], sizes = [2, 32], strides = [1, 1]} : vector<2x64xf32> to vector<2x32xf32>
    %74 = arith.addf %66, %72 : vector<2x32xf32>
    %75 = math.tanh %74 : vector<2x32xf32>
    %cst_43 = arith.constant 1.000000e+00 : f32
    %76 = vector.broadcast %cst_43 : f32 to vector<2x32xf32>
    %77 = arith.addf %76, %75 : vector<2x32xf32>
    %78 = arith.addf %68, %73 : vector<2x32xf32>
    %79 = arith.negf %78 : vector<2x32xf32>
    %80 = math.exp %79 : vector<2x32xf32>
    %cst_44 = arith.constant 1.000000e+00 : f32
    %81 = vector.broadcast %cst_44 : f32 to vector<2x32xf32>
    %82 = arith.addf %81, %80 : vector<2x32xf32>
    %83 = arith.divf %81, %82 : vector<2x32xf32>
    %84 = arith.mulf %83, %61 : vector<2x32xf32>
    %cst_45 = arith.constant 1.000000e+00 : f32
    %85 = vector.broadcast %cst_45 : f32 to vector<2x32xf32>
    %86 = arith.subf %85, %83 : vector<2x32xf32>
    %87 = arith.mulf %77, %61 : vector<2x32xf32>
    %88 = arith.addf %70, %87 : vector<2x32xf32>
    %89 = math.tanh %88 : vector<2x32xf32>
    %90 = arith.mulf %86, %89 : vector<2x32xf32>
    %91 = arith.addf %84, %90 : vector<2x32xf32>
    %c0_46 = arith.constant 0 : index
    %c2_47 = arith.constant 2 : index
    %c0_48 = arith.constant 0 : index
    %92 = vector.load %arg6[%c0_46, %c2_47, %c0_48] : memref<2x8x32xf32, #tpu.memory_space<vmem>>, vector<2x1x32xf32>
    %93 = vector.shape_cast %92 : vector<2x1x32xf32> to vector<2x32xf32>
    %94 = vector.shape_cast %91 : vector<2x32xf32> to vector<2x1x32xf32>
    tpu.vector_store %arg6[%c0_46, %c2_47, %c0_48], %94 {strides = array<i32>} : memref<2x8x32xf32, #tpu.memory_space<vmem>>, vector<2x1x32xf32>,
    %c0_49 = arith.constant 0 : index
    %c3 = arith.constant 3 : index
    %c0_50 = arith.constant 0 : index
    %95 = vector.load %arg1[%c0_49, %c3, %c0_50] : memref<2x8x32xf32, #tpu.memory_space<vmem>>, vector<2x1x32xf32>
    %96 = vector.shape_cast %95 : vector<2x1x32xf32> to vector<2x32xf32>
    %c0_51 = arith.constant 0 : index
    %c3_52 = arith.constant 3 : index
    %c0_53 = arith.constant 0 : index
    %97 = vector.load %arg2[%c0_51, %c3_52, %c0_53] : memref<2x8x32xf32, #tpu.memory_space<vmem>>, vector<2x1x32xf32>
    %98 = vector.shape_cast %97 : vector<2x1x32xf32> to vector<2x32xf32>
    %c0_54 = arith.constant 0 : index
    %c3_55 = arith.constant 3 : index
    %c0_56 = arith.constant 0 : index
    %99 = vector.load %arg3[%c0_54, %c3_55, %c0_56] : memref<2x8x32xf32, #tpu.memory_space<vmem>>, vector<2x1x32xf32>
    %100 = vector.shape_cast %99 : vector<2x1x32xf32> to vector<2x32xf32>
    %cst_57 = arith.constant dense<0.000000e+00> : vector<2x64xf32>
    %101 = tpu.matmul %91, %4, %cst_57 {dimension_numbers = #tpu.dot_dimension_numbers<[1], [0], [0], [1], [0, 0, 1, 1], [], []>} : vector<2x32xf32>, vector<32x64xf32>, vector<2x64xf32> -> vector<2x64xf32>
    %102 = vector.extract_strided_slice %101 {offsets = [0, 0], sizes = [2, 32], strides = [1, 1]} : vector<2x64xf32> to vector<2x32xf32>
    %103 = vector.extract_strided_slice %101 {offsets = [0, 32], sizes = [2, 32], strides = [1, 1]} : vector<2x64xf32> to vector<2x32xf32>
    %104 = arith.addf %96, %102 : vector<2x32xf32>
    %105 = math.tanh %104 : vector<2x32xf32>
    %cst_58 = arith.constant 1.000000e+00 : f32
    %106 = vector.broadcast %cst_58 : f32 to vector<2x32xf32>
    %107 = arith.addf %106, %105 : vector<2x32xf32>
    %108 = arith.addf %98, %103 : vector<2x32xf32>
    %109 = arith.negf %108 : vector<2x32xf32>
    %110 = math.exp %109 : vector<2x32xf32>
    %cst_59 = arith.constant 1.000000e+00 : f32
    %111 = vector.broadcast %cst_59 : f32 to vector<2x32xf32>
    %112 = arith.addf %111, %110 : vector<2x32xf32>
    %113 = arith.divf %111, %112 : vector<2x32xf32>
    %114 = arith.mulf %113, %91 : vector<2x32xf32>
    %cst_60 = arith.constant 1.000000e+00 : f32
    %115 = vector.broadcast %cst_60 : f32 to vector<2x32xf32>
    %116 = arith.subf %115, %113 : vector<2x32xf32>
    %117 = arith.mulf %107, %91 : vector<2x32xf32>
    %118 = arith.addf %100, %117 : vector<2x32xf32>
    %119 = math.tanh %118 : vector<2x32xf32>
    %120 = arith.mulf %116, %119 : vector<2x32xf32>
    %121 = arith.addf %114, %120 : vector<2x32xf32>
    %c0_61 = arith.constant 0 : index
    %c3_62 = arith.constant 3 : index
    %c0_63 = arith.constant 0 : index
    %122 = vector.load %arg6[%c0_61, %c3_62, %c0_63] : memref<2x8x32xf32, #tpu.memory_space<vmem>>, vector<2x1x32xf32>
    %123 = vector.shape_cast %122 : vector<2x1x32xf32> to vector<2x32xf32>
    %124 = vector.shape_cast %121 : vector<2x32xf32> to vector<2x1x32xf32>
    tpu.vector_store %arg6[%c0_61, %c3_62, %c0_63], %124 {strides = array<i32>} : memref<2x8x32xf32, #tpu.memory_space<vmem>>, vector<2x1x32xf32>,
    %c0_64 = arith.constant 0 : index
    %c4 = arith.constant 4 : index
    %c0_65 = arith.constant 0 : index
    %125 = vector.load %arg1[%c0_64, %c4, %c0_65] : memref<2x8x32xf32, #tpu.memory_space<vmem>>, vector<2x1x32xf32>
    %126 = vector.shape_cast %125 : vector<2x1x32xf32> to vector<2x32xf32>
    %c0_66 = arith.constant 0 : index
    %c4_67 = arith.constant 4 : index
    %c0_68 = arith.constant 0 : index
    %127 = vector.load %arg2[%c0_66, %c4_67, %c0_68] : memref<2x8x32xf32, #tpu.memory_space<vmem>>, vector<2x1x32xf32>
    %128 = vector.shape_cast %127 : vector<2x1x32xf32> to vector<2x32xf32>
    %c0_69 = arith.constant 0 : index
    %c4_70 = arith.constant 4 : index
    %c0_71 = arith.constant 0 : index
    %129 = vector.load %arg3[%c0_69, %c4_70, %c0_71] : memref<2x8x32xf32, #tpu.memory_space<vmem>>, vector<2x1x32xf32>
    %130 = vector.shape_cast %129 : vector<2x1x32xf32> to vector<2x32xf32>
    %cst_72 = arith.constant dense<0.000000e+00> : vector<2x64xf32>
    %131 = tpu.matmul %121, %4, %cst_72 {dimension_numbers = #tpu.dot_dimension_numbers<[1], [0], [0], [1], [0, 0, 1, 1], [], []>} : vector<2x32xf32>, vector<32x64xf32>, vector<2x64xf32> -> vector<2x64xf32>
    %132 = vector.extract_strided_slice %131 {offsets = [0, 0], sizes = [2, 32], strides = [1, 1]} : vector<2x64xf32> to vector<2x32xf32>
    %133 = vector.extract_strided_slice %131 {offsets = [0, 32], sizes = [2, 32], strides = [1, 1]} : vector<2x64xf32> to vector<2x32xf32>
    %134 = arith.addf %126, %132 : vector<2x32xf32>
    %135 = math.tanh %134 : vector<2x32xf32>
    %cst_73 = arith.constant 1.000000e+00 : f32
    %136 = vector.broadcast %cst_73 : f32 to vector<2x32xf32>
    %137 = arith.addf %136, %135 : vector<2x32xf32>
    %138 = arith.addf %128, %133 : vector<2x32xf32>
    %139 = arith.negf %138 : vector<2x32xf32>
    %140 = math.exp %139 : vector<2x32xf32>
    %cst_74 = arith.constant 1.000000e+00 : f32
    %141 = vector.broadcast %cst_74 : f32 to vector<2x32xf32>
    %142 = arith.addf %141, %140 : vector<2x32xf32>
    %143 = arith.divf %141, %142 : vector<2x32xf32>
    %144 = arith.mulf %143, %121 : vector<2x32xf32>
    %cst_75 = arith.constant 1.000000e+00 : f32
    %145 = vector.broadcast %cst_75 : f32 to vector<2x32xf32>
    %146 = arith.subf %145, %143 : vector<2x32xf32>
    %147 = arith.mulf %137, %121 : vector<2x32xf32>
    %148 = arith.addf %130, %147 : vector<2x32xf32>
    %149 = math.tanh %148 : vector<2x32xf32>
    %150 = arith.mulf %146, %149 : vector<2x32xf32>
    %151 = arith.addf %144, %150 : vector<2x32xf32>
    %c0_76 = arith.constant 0 : index
    %c4_77 = arith.constant 4 : index
    %c0_78 = arith.constant 0 : index
    %152 = vector.load %arg6[%c0_76, %c4_77, %c0_78] : memref<2x8x32xf32, #tpu.memory_space<vmem>>, vector<2x1x32xf32>
    %153 = vector.shape_cast %152 : vector<2x1x32xf32> to vector<2x32xf32>
    %154 = vector.shape_cast %151 : vector<2x32xf32> to vector<2x1x32xf32>
    tpu.vector_store %arg6[%c0_76, %c4_77, %c0_78], %154 {strides = array<i32>} : memref<2x8x32xf32, #tpu.memory_space<vmem>>, vector<2x1x32xf32>,
    %c0_79 = arith.constant 0 : index
    %c5 = arith.constant 5 : index
    %c0_80 = arith.constant 0 : index
    %155 = vector.load %arg1[%c0_79, %c5, %c0_80] : memref<2x8x32xf32, #tpu.memory_space<vmem>>, vector<2x1x32xf32>
    %156 = vector.shape_cast %155 : vector<2x1x32xf32> to vector<2x32xf32>
    %c0_81 = arith.constant 0 : index
    %c5_82 = arith.constant 5 : index
    %c0_83 = arith.constant 0 : index
    %157 = vector.load %arg2[%c0_81, %c5_82, %c0_83] : memref<2x8x32xf32, #tpu.memory_space<vmem>>, vector<2x1x32xf32>
    %158 = vector.shape_cast %157 : vector<2x1x32xf32> to vector<2x32xf32>
    %c0_84 = arith.constant 0 : index
    %c5_85 = arith.constant 5 : index
    %c0_86 = arith.constant 0 : index
    %159 = vector.load %arg3[%c0_84, %c5_85, %c0_86] : memref<2x8x32xf32, #tpu.memory_space<vmem>>, vector<2x1x32xf32>
    %160 = vector.shape_cast %159 : vector<2x1x32xf32> to vector<2x32xf32>
    %cst_87 = arith.constant dense<0.000000e+00> : vector<2x64xf32>
    %161 = tpu.matmul %151, %4, %cst_87 {dimension_numbers = #tpu.dot_dimension_numbers<[1], [0], [0], [1], [0, 0, 1, 1], [], []>} : vector<2x32xf32>, vector<32x64xf32>, vector<2x64xf32> -> vector<2x64xf32>
    %162 = vector.extract_strided_slice %161 {offsets = [0, 0], sizes = [2, 32], strides = [1, 1]} : vector<2x64xf32> to vector<2x32xf32>
    %163 = vector.extract_strided_slice %161 {offsets = [0, 32], sizes = [2, 32], strides = [1, 1]} : vector<2x64xf32> to vector<2x32xf32>
    %164 = arith.addf %156, %162 : vector<2x32xf32>
    %165 = math.tanh %164 : vector<2x32xf32>
    %cst_88 = arith.constant 1.000000e+00 : f32
    %166 = vector.broadcast %cst_88 : f32 to vector<2x32xf32>
    %167 = arith.addf %166, %165 : vector<2x32xf32>
    %168 = arith.addf %158, %163 : vector<2x32xf32>
    %169 = arith.negf %168 : vector<2x32xf32>
    %170 = math.exp %169 : vector<2x32xf32>
    %cst_89 = arith.constant 1.000000e+00 : f32
    %171 = vector.broadcast %cst_89 : f32 to vector<2x32xf32>
    %172 = arith.addf %171, %170 : vector<2x32xf32>
    %173 = arith.divf %171, %172 : vector<2x32xf32>
    %174 = arith.mulf %173, %151 : vector<2x32xf32>
    %cst_90 = arith.constant 1.000000e+00 : f32
    %175 = vector.broadcast %cst_90 : f32 to vector<2x32xf32>
    %176 = arith.subf %175, %173 : vector<2x32xf32>
    %177 = arith.mulf %167, %151 : vector<2x32xf32>
    %178 = arith.addf %160, %177 : vector<2x32xf32>
    %179 = math.tanh %178 : vector<2x32xf32>
    %180 = arith.mulf %176, %179 : vector<2x32xf32>
    %181 = arith.addf %174, %180 : vector<2x32xf32>
    %c0_91 = arith.constant 0 : index
    %c5_92 = arith.constant 5 : index
    %c0_93 = arith.constant 0 : index
    %182 = vector.load %arg6[%c0_91, %c5_92, %c0_93] : memref<2x8x32xf32, #tpu.memory_space<vmem>>, vector<2x1x32xf32>
    %183 = vector.shape_cast %182 : vector<2x1x32xf32> to vector<2x32xf32>
    %184 = vector.shape_cast %181 : vector<2x32xf32> to vector<2x1x32xf32>
    tpu.vector_store %arg6[%c0_91, %c5_92, %c0_93], %184 {strides = array<i32>} : memref<2x8x32xf32, #tpu.memory_space<vmem>>, vector<2x1x32xf32>,
    %c0_94 = arith.constant 0 : index
    %c6 = arith.constant 6 : index
    %c0_95 = arith.constant 0 : index
    %185 = vector.load %arg1[%c0_94, %c6, %c0_95] : memref<2x8x32xf32, #tpu.memory_space<vmem>>, vector<2x1x32xf32>
    %186 = vector.shape_cast %185 : vector<2x1x32xf32> to vector<2x32xf32>
    %c0_96 = arith.constant 0 : index
    %c6_97 = arith.constant 6 : index
    %c0_98 = arith.constant 0 : index
    %187 = vector.load %arg2[%c0_96, %c6_97, %c0_98] : memref<2x8x32xf32, #tpu.memory_space<vmem>>, vector<2x1x32xf32>
    %188 = vector.shape_cast %187 : vector<2x1x32xf32> to vector<2x32xf32>
    %c0_99 = arith.constant 0 : index
    %c6_100 = arith.constant 6 : index
    %c0_101 = arith.constant 0 : index
    %189 = vector.load %arg3[%c0_99, %c6_100, %c0_101] : memref<2x8x32xf32, #tpu.memory_space<vmem>>, vector<2x1x32xf32>
    %190 = vector.shape_cast %189 : vector<2x1x32xf32> to vector<2x32xf32>
    %cst_102 = arith.constant dense<0.000000e+00> : vector<2x64xf32>
    %191 = tpu.matmul %181, %4, %cst_102 {dimension_numbers = #tpu.dot_dimension_numbers<[1], [0], [0], [1], [0, 0, 1, 1], [], []>} : vector<2x32xf32>, vector<32x64xf32>, vector<2x64xf32> -> vector<2x64xf32>
    %192 = vector.extract_strided_slice %191 {offsets = [0, 0], sizes = [2, 32], strides = [1, 1]} : vector<2x64xf32> to vector<2x32xf32>
    %193 = vector.extract_strided_slice %191 {offsets = [0, 32], sizes = [2, 32], strides = [1, 1]} : vector<2x64xf32> to vector<2x32xf32>
    %194 = arith.addf %186, %192 : vector<2x32xf32>
    %195 = math.tanh %194 : vector<2x32xf32>
    %cst_103 = arith.constant 1.000000e+00 : f32
    %196 = vector.broadcast %cst_103 : f32 to vector<2x32xf32>
    %197 = arith.addf %196, %195 : vector<2x32xf32>
    %198 = arith.addf %188, %193 : vector<2x32xf32>
    %199 = arith.negf %198 : vector<2x32xf32>
    %200 = math.exp %199 : vector<2x32xf32>
    %cst_104 = arith.constant 1.000000e+00 : f32
    %201 = vector.broadcast %cst_104 : f32 to vector<2x32xf32>
    %202 = arith.addf %201, %200 : vector<2x32xf32>
    %203 = arith.divf %201, %202 : vector<2x32xf32>
    %204 = arith.mulf %203, %181 : vector<2x32xf32>
    %cst_105 = arith.constant 1.000000e+00 : f32
    %205 = vector.broadcast %cst_105 : f32 to vector<2x32xf32>
    %206 = arith.subf %205, %203 : vector<2x32xf32>
    %207 = arith.mulf %197, %181 : vector<2x32xf32>
    %208 = arith.addf %190, %207 : vector<2x32xf32>
    %209 = math.tanh %208 : vector<2x32xf32>
    %210 = arith.mulf %206, %209 : vector<2x32xf32>
    %211 = arith.addf %204, %210 : vector<2x32xf32>
    %c0_106 = arith.constant 0 : index
    %c6_107 = arith.constant 6 : index
    %c0_108 = arith.constant 0 : index
    %212 = vector.load %arg6[%c0_106, %c6_107, %c0_108] : memref<2x8x32xf32, #tpu.memory_space<vmem>>, vector<2x1x32xf32>
    %213 = vector.shape_cast %212 : vector<2x1x32xf32> to vector<2x32xf32>
    %214 = vector.shape_cast %211 : vector<2x32xf32> to vector<2x1x32xf32>
    tpu.vector_store %arg6[%c0_106, %c6_107, %c0_108], %214 {strides = array<i32>} : memref<2x8x32xf32, #tpu.memory_space<vmem>>, vector<2x1x32xf32>,
    %c0_109 = arith.constant 0 : index
    %c7 = arith.constant 7 : index
    %c0_110 = arith.constant 0 : index
    %215 = vector.load %arg1[%c0_109, %c7, %c0_110] : memref<2x8x32xf32, #tpu.memory_space<vmem>>, vector<2x1x32xf32>
    %216 = vector.shape_cast %215 : vector<2x1x32xf32> to vector<2x32xf32>
    %c0_111 = arith.constant 0 : index
    %c7_112 = arith.constant 7 : index
    %c0_113 = arith.constant 0 : index
    %217 = vector.load %arg2[%c0_111, %c7_112, %c0_113] : memref<2x8x32xf32, #tpu.memory_space<vmem>>, vector<2x1x32xf32>
    %218 = vector.shape_cast %217 : vector<2x1x32xf32> to vector<2x32xf32>
    %c0_114 = arith.constant 0 : index
    %c7_115 = arith.constant 7 : index
    %c0_116 = arith.constant 0 : index
    %219 = vector.load %arg3[%c0_114, %c7_115, %c0_116] : memref<2x8x32xf32, #tpu.memory_space<vmem>>, vector<2x1x32xf32>
    %220 = vector.shape_cast %219 : vector<2x1x32xf32> to vector<2x32xf32>
    %cst_117 = arith.constant dense<0.000000e+00> : vector<2x64xf32>
    %221 = tpu.matmul %211, %4, %cst_117 {dimension_numbers = #tpu.dot_dimension_numbers<[1], [0], [0], [1], [0, 0, 1, 1], [], []>} : vector<2x32xf32>, vector<32x64xf32>, vector<2x64xf32> -> vector<2x64xf32>
    %222 = vector.extract_strided_slice %221 {offsets = [0, 0], sizes = [2, 32], strides = [1, 1]} : vector<2x64xf32> to vector<2x32xf32>
    %223 = vector.extract_strided_slice %221 {offsets = [0, 32], sizes = [2, 32], strides = [1, 1]} : vector<2x64xf32> to vector<2x32xf32>
    %224 = arith.addf %216, %222 : vector<2x32xf32>
    %225 = math.tanh %224 : vector<2x32xf32>
    %cst_118 = arith.constant 1.000000e+00 : f32
    %226 = vector.broadcast %cst_118 : f32 to vector<2x32xf32>
    %227 = arith.addf %226, %225 : vector<2x32xf32>
    %228 = arith.addf %218, %223 : vector<2x32xf32>
    %229 = arith.negf %228 : vector<2x32xf32>
    %230 = math.exp %229 : vector<2x32xf32>
    %cst_119 = arith.constant 1.000000e+00 : f32
    %231 = vector.broadcast %cst_119 : f32 to vector<2x32xf32>
    %232 = arith.addf %231, %230 : vector<2x32xf32>
    %233 = arith.divf %231, %232 : vector<2x32xf32>
    %234 = arith.mulf %233, %211 : vector<2x32xf32>
    %cst_120 = arith.constant 1.000000e+00 : f32
    %235 = vector.broadcast %cst_120 : f32 to vector<2x32xf32>
    %236 = arith.subf %235, %233 : vector<2x32xf32>
    %237 = arith.mulf %227, %211 : vector<2x32xf32>
    %238 = arith.addf %220, %237 : vector<2x32xf32>
    %239 = math.tanh %238 : vector<2x32xf32>
    %240 = arith.mulf %236, %239 : vector<2x32xf32>
    %241 = arith.addf %234, %240 : vector<2x32xf32>
    %c0_121 = arith.constant 0 : index
    %c7_122 = arith.constant 7 : index
    %c0_123 = arith.constant 0 : index
    %242 = vector.load %arg6[%c0_121, %c7_122, %c0_123] : memref<2x8x32xf32, #tpu.memory_space<vmem>>, vector<2x1x32xf32>
    %243 = vector.shape_cast %242 : vector<2x1x32xf32> to vector<2x32xf32>
    %244 = vector.shape_cast %241 : vector<2x32xf32> to vector<2x1x32xf32>
    tpu.vector_store %arg6[%c0_121, %c7_122, %c0_123], %244 {strides = array<i32>} : memref<2x8x32xf32, #tpu.memory_space<vmem>>, vector<2x1x32xf32>,
    %c0_124 = arith.constant 0 : index
    %c0_125 = arith.constant 0 : index
    %245 = vector.load %arg7[%c0_124, %c0_125] : memref<2x32xf32, #tpu.memory_space<vmem>>, vector<2x32xf32>
    tpu.vector_store %arg7[%c0_124, %c0_125], %241 {strides = array<i32>} : memref<2x32xf32, #tpu.memory_space<vmem>>, vector<2x32xf32>,
    return
  }
  func.func @transform_0(%arg0: i32) -> (i32, i32, i32) {
    %c0_i32 = arith.constant 0 : i32
    %c0_i32_0 = arith.constant 0 : i32
    %c0_i32_1 = arith.constant 0 : i32
    return %c0_i32, %arg0, %c0_i32_0 : i32, i32, i32
  }
  func.func @transform_1(%arg0: i32) -> (i32, i32, i32) {
    %c0_i32 = arith.constant 0 : i32
    %c0_i32_0 = arith.constant 0 : i32
    %c0_i32_1 = arith.constant 0 : i32
    return %c0_i32, %arg0, %c0_i32_0 : i32, i32, i32
  }
  func.func @transform_2(%arg0: i32) -> (i32, i32, i32) {
    %c0_i32 = arith.constant 0 : i32
    %c0_i32_0 = arith.constant 0 : i32
    %c0_i32_1 = arith.constant 0 : i32
    return %c0_i32, %arg0, %c0_i32_0 : i32, i32, i32
  }
  func.func @transform_3(%arg0: i32) -> (i32, i32) {
    %c0_i32 = arith.constant 0 : i32
    %c0_i32_0 = arith.constant 0 : i32
    %c0_i32_1 = arith.constant 0 : i32
    return %c0_i32, %c0_i32_0 : i32, i32
  }
  func.func @transform_4(%arg0: i32) -> (i32, i32) {
    %c0_i32 = arith.constant 0 : i32
    %c0_i32_0 = arith.constant 0 : i32
    %c0_i32_1 = arith.constant 0 : i32
    return %c0_i32, %c0_i32_0 : i32, i32
  }
  func.func @transform_5(%arg0: i32) -> (i32, i32, i32) {
    %c0_i32 = arith.constant 0 : i32
    %c0_i32_0 = arith.constant 0 : i32
    %c0_i32_1 = arith.constant 0 : i32
    return %c0_i32, %arg0, %c0_i32_0 : i32, i32, i32
  }
}

</mosaic_0001>

<llo_original>
// kernel: nbrc_forward.1
$region0: #{nbrc_forward.1}
  #allocation0 [shape = 'u32[]', space=smem, size = 0x4, offset = 0x4, fixed_abs, tag = 'smem constant byte address 0x4 - core index']
  #allocation1 [shape = 'u32[144,128]{1,0:T(1,128)}', space=vmem, size = 0x12000, scoped, tag = 'internal scratch']
  #allocation2 [shape = 'f32[2,32]{1,0:T(2,128)}', space=vmem, size = 0x400, scoped, tag = 'scratch operand']
  %s0 = inlined_call_operand.vmem [shape: f32[2,8,32], index: 0, kind: input, shape index: {}]
  %s1 = inlined_call_operand.vmem [shape: f32[2,8,32], index: 1, kind: input, shape index: {}]
  %s2 = inlined_call_operand.vmem [shape: f32[2,8,32], index: 2, kind: input, shape index: {}]
  %s3 = inlined_call_operand.vmem [shape: f32[2,32], index: 3, kind: input, shape index: {}]
  %s4 = inlined_call_operand.vmem [shape: f32[32,64], index: 4, kind: input, shape index: {}]
  %s5 = inlined_call_operand.vmem [shape: f32[2,8,32], index: 5, kind: output, shape index: {}]
  %s6 = sld [smem:[#allocation0]]
  $region34: #{nbrc_forward.1} parent=0
    _
  %s8 = ssub.s32 1, %s6
  %s9 = scalar_select 0, %s8, %s6
  // Predicated region
  $region2: #{nbrc_forward.1} parent=0 // pred_check
    _
  $region3: #{nbrc_forward.1} parent=0 // pred_check_branch
    %11 = sbr.rel (0) target = $region5
  $region4: #{nbrc_forward.1} parent=0 // pred_region
    _
  $region5: #{nbrc_forward.1} parent=0 // pred_fallthru
    _
  // Predicated region
  $region6: #{nbrc_forward.1} parent=0 // pred_check
    _
  $region7: #{nbrc_forward.1} parent=0 // pred_check_branch
    %13 = sbr.rel (0) target = $region9
  $region8: #{nbrc_forward.1} parent=0 // pred_region
    _
  $region9: #{nbrc_forward.1} parent=0 // pred_fallthru
    _
  // Predicated region
  $region10: #{nbrc_forward.1} parent=0 // pred_check
    _
  $region11: #{nbrc_forward.1} parent=0 // pred_check_branch
    %15 = sbr.rel (0) target = $region13
  $region12: #{nbrc_forward.1} parent=0 // pred_region
    _
  $region13: #{nbrc_forward.1} parent=0 // pred_fallthru
    _
  // Predicated region
  $region14: #{nbrc_forward.1} parent=0 // pred_check
    _
  $region15: #{nbrc_forward.1} parent=0 // pred_check_branch
    %17 = sbr.rel (0) target = $region17
  $region16: #{nbrc_forward.1} parent=0 // pred_region
    _
  $region17: #{nbrc_forward.1} parent=0 // pred_fallthru
    _
  // Predicated region
  $region18: #{nbrc_forward.1} parent=0 // pred_check
    _
  $region19: #{nbrc_forward.1} parent=0 // pred_check_branch
    %19 = sbr.rel (0) target = $region21
  $region20: #{nbrc_forward.1} parent=0 // pred_region
    _
  $region21: #{nbrc_forward.1} parent=0 // pred_fallthru
    _
  %p20 = scmp.eq.s32.totalorder 0, 0
  // Predicated region
  $region22: #{nbrc_forward.1} parent=0 // pred_check
    %p21 = pneg %p20
  $region23: #{nbrc_forward.1} parent=0 // pred_check_branch
    %23 = sbr.rel (%p21) target = $region25
  $region24: #{nbrc_forward.1} parent=0 // pred_region
    %v24 = vld [vmem:[%s3] sm:$0x3]
    %vm25 = vcmask 254976
    %26 = vst.msk [vmem:[#allocation2] sm:$0x3] %vm25, %v24
  $region25: #{nbrc_forward.1} parent=0 // pred_fallthru
    _
  %v27 = vld [vmem:[#allocation2] sm:$0x3]
  %v28 = vld [vmem:[%s4] sm:$0xff]
  %v29 = vld [vmem:[%s4 + $0x8] sm:$0xff]
  %v30 = vld [vmem:[%s4 + $0x10] sm:$0xff]
  %v31 = vld [vmem:[%s4 + $0x18] sm:$0xff]
  %v32 = vld [vmem:[%s0] sm:$0x1]
  %v33 = vld [vmem:[%s0 + $0x8] sm:$0x1]
  %v34 = vld [vmem:[%s1] sm:$0x1]
  %v35 = vld [vmem:[%s1 + $0x8] sm:$0x1]
  %v36 = vld [vmem:[%s2] sm:$0x1]
  %v37 = vld [vmem:[%s2 + $0x8] sm:$0x1]
  %vm38 = vcmask 261120
  %v40 = vsel %vm38, %v27, 0
  %42 = vmatprep.subr.mxu0 0.0
  %43 = vmatpush1.msra.mxu0 %v28
  %44 = vmatprep.subr.mxu0 0.0
  %45 = vmatpush1.msra.mxu0 %v29
  %46 = vmatprep.subr.mxu0 0.0
  %47 = vmatpush1.msra.mxu0 %v30
  %48 = vmatprep.subr.mxu0 0.0
  %49 = vmatpush1.msra.mxu0 %v31
  %50 = vmatprep.subr.mxu0 0.0
  %51 = vmatpush1.msra.mxu0 0.0
  %52 = vmatprep.subr.mxu0 0.0
  %53 = vmatpush1.msra.mxu0 0.0
  %54 = vmatprep.subr.mxu0 0.0
  %55 = vmatpush1.msra.mxu0 0.0
  %56 = vmatprep.subr.mxu0 0.0
  %57 = vmatpush1.msra.mxu0 0.0
  %58 = vmatprep.subr.mxu0 0.0
  %59 = vmatpush1.msra.mxu0 0.0
  %60 = vmatprep.subr.mxu0 0.0
  %61 = vmatpush1.msra.mxu0 0.0
  %62 = vmatprep.subr.mxu0 0.0
  %63 = vmatpush1.msra.mxu0 0.0
  %64 = vmatprep.subr.mxu0 0.0
  %65 = vmatpush1.msra.mxu0 0.0
  %66 = vmatprep.subr.mxu0 0.0
  %67 = vmatpush1.msra.mxu0 0.0
  %68 = vmatprep.subr.mxu0 0.0
  %69 = vmatpush1.msra.mxu0 0.0
  %70 = vmatprep.subr.mxu0 0.0
  %71 = vmatpush1.msra.mxu0 0.0
  %72 = vmatprep.subr.mxu0 0.0
  %73 = vmatpush1.msra.mxu0 0.0
  %74 = vmatprep.subr.mxu0 0.0
  %75 = vmatpush1.msra.mxu0 0.0
  %76 = vmatprep.subr.mxu0 0.0
  %77 = vmatpush1.msra.mxu0 0.0
  %78 = vmatprep.subr.mxu0 0.0
  %79 = vmatpush1.msra.mxu0 0.0
  %80 = vmatprep.subr.mxu0 0.0
  %81 = vmatpush1.msra.mxu0 0.0
  %82 = vmatprep.subr.mxu0 0.0
  %83 = vmatpush1.msra.mxu0 0.0
  %84 = vmatprep.subr.mxu0 0.0
  %85 = vmatpush1.msra.mxu0 0.0
  %86 = vmatprep.subr.mxu0 0.0
  %87 = vmatpush1.msra.mxu0 0.0
  %88 = vmatprep.subr.mxu0 0.0
  %89 = vmatpush1.msra.mxu0 0.0
  %90 = vmatprep.subr.mxu0 0.0
  %91 = vmatpush1.msra.mxu0 0.0
  %92 = vmatprep.subr.mxu0 0.0
  %93 = vmatpush1.msra.mxu0 0.0
  %94 = vmatprep.subr.mxu0 0.0
  %95 = vmatpush1.msra.mxu0 0.0
  %96 = vmatprep.subr.mxu0 0.0
  %97 = vmatpush1.msra.mxu0 0.0
  %98 = vmatprep.subr.mxu0 0.0
  %99 = vmatpush1.msra.mxu0 0.0
  %100 = vmatprep.subr.mxu0 0.0
  %101 = vmatpush1.msra.mxu0 0.0
  %102 = vmatprep.subr.mxu0 0.0
  %103 = vmatpush1.msra.mxu0 0.0
  %104 = vmatprep.subr.mxu0 0.0
  %105 = vmatpush1.msra.mxu0 0.0
  %106 = vmatprep.mubr.f32.mxu0 0.0
  %107 = vmatmul.mubr.f32.gmra.mrb[0].mxu0 %v40
  %v108 = vpop.f32.mrb[0].mxu0
  %v109 = vadd.f32 0.0, %v108
  %v110 = vpop.f32.mrb[0].mxu0
  %111 = vdwg.mxu0
  %v113 = vrot.slane %v109, 1
  %v116 = vadd.f32 %v32, %v109
  %v117 = vadd.f32 %v33, %v113
  %v118 = vtanh.pop %v116
  %v119 = vtanh.pop %v117
  %v120 = vadd.f32 %v118, 1.0
  %v121 = vadd.f32 %v119, 1.0
  %122 = vrot.lane.b32.xlu0 %v109, 96
  %v123 = vpop.permute.xlu0 %122
  %124 = vrot.lane.b32.xlu0 %v113, 96
  %v125 = vpop.permute.xlu0 %124
  %v128 = vadd.f32 %v34, %v123
  %v129 = vadd.f32 %v35, %v125
  %v130 = vxor.u32 %v128, 2147483648
  %v131 = vxor.u32 %v129, 2147483648
  %v132 = vmul.f32 %v130, 1.442695
  %v133 = vpow.pop %v132
  %v134 = vmul.f32 %v131, 1.442695
  %v135 = vpow.pop %v134
  %v136 = vadd.f32 %v133, 1.0
  %v137 = vadd.f32 %v135, 1.0
  %v138 = vrcp.pop %v136
  %v139 = vmul.f32 1.0, %v138
  %v140 = vrcp.pop %v137
  %v141 = vmul.f32 1.0, %v140
  %v142 = vrot.slane %v27, 1
  %v145 = vmul.f32 %v139, %v27
  %v146 = vmul.f32 %v141, %v142
  %v147 = vsub.f32 1.0, %v139
  %v148 = vsub.f32 1.0, %v141
  %v149 = vmul.f32 %v120, %v27
  %v150 = vmul.f32 %v121, %v142
  %v151 = vadd.f32 %v36, %v149
  %v152 = vadd.f32 %v37, %v150
  %v153 = vtanh.pop %v151
  %v154 = vtanh.pop %v152
  %v155 = vmul.f32 %v147, %v153
  %v156 = vmul.f32 %v148, %v154
  %v157 = vadd.f32 %v145, %v155
  %v158 = vadd.f32 %v146, %v156
  %vm159 = vcmask 253952
  %160 = vst.msk [vmem:[%s5] sm:$0x1] %vm159, %v157
  %161 = vst.msk [vmem:[%s5 + $0x8] sm:$0x1] %vm159, %v158
  %v162 = vld [vmem:[%s0 + $0x1] sm:$0x1]
  %v163 = vld [vmem:[%s0 + $0x9] sm:$0x1]
  %v164 = vld [vmem:[%s1 + $0x1] sm:$0x1]
  %v165 = vld [vmem:[%s1 + $0x9] sm:$0x1]
  %v166 = vld [vmem:[%s2 + $0x1] sm:$0x1]
  %v167 = vld [vmem:[%s2 + $0x9] sm:$0x1]
  %v170 = vrot.slane %v158, 7
  %vm171 = vcmask 1041409
  %v172 = vsel %vm171, %v170, %v157
  %v173 = vsel %vm38, %v172, 0
  %175 = vmatprep.subr.mxu0 0.0
  %176 = vmatpush1.msra.mxu0 %v28
  %177 = vmatprep.subr.mxu0 0.0
  %178 = vmatpush1.msra.mxu0 %v29
  %179 = vmatprep.subr.mxu0 0.0
  %180 = vmatpush1.msra.mxu0 %v30
  %181 = vmatprep.subr.mxu0 0.0
  %182 = vmatpush1.msra.mxu0 %v31
  %183 = vmatprep.subr.mxu0 0.0
  %184 = vmatpush1.msra.mxu0 0.0
  %185 = vmatprep.subr.mxu0 0.0
  %186 = vmatpush1.msra.mxu0 0.0
  %187 = vmatprep.subr.mxu0 0.0
  %188 = vmatpush1.msra.mxu0 0.0
  %189 = vmatprep.subr.mxu0 0.0
  %190 = vmatpush1.msra.mxu0 0.0
  %191 = vmatprep.subr.mxu0 0.0
  %192 = vmatpush1.msra.mxu0 0.0
  %193 = vmatprep.subr.mxu0 0.0
  %194 = vmatpush1.msra.mxu0 0.0
  %195 = vmatprep.subr.mxu0 0.0
  %196 = vmatpush1.msra.mxu0 0.0
  %197 = vmatprep.subr.mxu0 0.0
  %198 = vmatpush1.msra.mxu0 0.0
  %199 = vmatprep.subr.mxu0 0.0
  %200 = vmatpush1.msra.mxu0 0.0
  %201 = vmatprep.subr.mxu0 0.0
  %202 = vmatpush1.msra.mxu0 0.0
  %203 = vmatprep.subr.mxu0 0.0
  %204 = vmatpush1.msra.mxu0 0.0
  %205 = vmatprep.subr.mxu0 0.0
  %206 = vmatpush1.msra.mxu0 0.0
  %207 = vmatprep.subr.mxu0 0.0
  %208 = vmatpush1.msra.mxu0 0.0
  %209 = vmatprep.subr.mxu0 0.0
  %210 = vmatpush1.msra.mxu0 0.0
  %211 = vmatprep.subr.mxu0 0.0
  %212 = vmatpush1.msra.mxu0 0.0
  %213 = vmatprep.subr.mxu0 0.0
  %214 = vmatpush1.msra.mxu0 0.0
  %215 = vmatprep.subr.mxu0 0.0
  %216 = vmatpush1.msra.mxu0 0.0
  %217 = vmatprep.subr.mxu0 0.0
  %218 = vmatpush1.msra.mxu0 0.0
  %219 = vmatprep.subr.mxu0 0.0
  %220 = vmatpush1.msra.mxu0 0.0
  %221 = vmatprep.subr.mxu0 0.0
  %222 = vmatpush1.msra.mxu0 0.0
  %223 = vmatprep.subr.mxu0 0.0
  %224 = vmatpush1.msra.mxu0 0.0
  %225 = vmatprep.subr.mxu0 0.0
  %226 = vmatpush1.msra.mxu0 0.0
  %227 = vmatprep.subr.mxu0 0.0
  %228 = vmatpush1.msra.mxu0 0.0
  %229 = vmatprep.subr.mxu0 0.0
  %230 = vmatpush1.msra.mxu0 0.0
  %231 = vmatprep.subr.mxu0 0.0
  %232 = vmatpush1.msra.mxu0 0.0
  %233 = vmatprep.subr.mxu0 0.0
  %234 = vmatpush1.msra.mxu0 0.0
  %235 = vmatprep.subr.mxu0 0.0
  %236 = vmatpush1.msra.mxu0 0.0
  %237 = vmatprep.subr.mxu0 0.0
  %238 = vmatpush1.msra.mxu0 0.0
  %239 = vmatprep.mubr.f32.mxu0 0.0
  %240 = vmatmul.mubr.f32.gmra.mrb[0].mxu0 %v173
  %v241 = vpop.f32.mrb[0].mxu0
  %v242 = vadd.f32 0.0, %v241
  %v243 = vpop.f32.mrb[0].mxu0
  %244 = vdwg.mxu0
  %v246 = vrot.slane %v242, 1
  %v249 = vadd.f32 %v162, %v242
  %v250 = vadd.f32 %v163, %v246
  %v251 = vtanh.pop %v249
  %v252 = vtanh.pop %v250
  %v253 = vadd.f32 %v251, 1.0
  %v254 = vadd.f32 %v252, 1.0
  %255 = vrot.lane.b32.xlu0 %v242, 96
  %v256 = vpop.permute.xlu0 %255
  %257 = vrot.lane.b32.xlu0 %v246, 96
  %v258 = vpop.permute.xlu0 %257
  %v261 = vadd.f32 %v164, %v256
  %v262 = vadd.f32 %v165, %v258
  %v263 = vxor.u32 %v261, 2147483648
  %v264 = vxor.u32 %v262, 2147483648
  %v265 = vmul.f32 %v263, 1.442695
  %v266 = vpow.pop %v265
  %v267 = vmul.f32 %v264, 1.442695
  %v268 = vpow.pop %v267
  %v269 = vadd.f32 %v266, 1.0
  %v270 = vadd.f32 %v268, 1.0
  %v271 = vrcp.pop %v269
  %v272 = vmul.f32 1.0, %v271
  %v273 = vrcp.pop %v270
  %v274 = vmul.f32 1.0, %v273
  %v275 = vmul.f32 %v272, %v157
  %v276 = vmul.f32 %v274, %v158
  %v277 = vsub.f32 1.0, %v272
  %v278 = vsub.f32 1.0, %v274
  %v279 = vmul.f32 %v253, %v157
  %v280 = vmul.f32 %v254, %v158
  %v281 = vadd.f32 %v166, %v279
  %v282 = vadd.f32 %v167, %v280
  %v283 = vtanh.pop %v281
  %v284 = vtanh.pop %v282
  %v285 = vmul.f32 %v277, %v283
  %v286 = vmul.f32 %v278, %v284
  %v287 = vadd.f32 %v275, %v285
  %v288 = vadd.f32 %v276, %v286
  %289 = vst.msk [vmem:[%s5 + $0x1] sm:$0x1] %vm159, %v287
  %290 = vst.msk [vmem:[%s5 + $0x9] sm:$0x1] %vm159, %v288
  %v291 = vld [vmem:[%s0 + $0x2] sm:$0x1]
  %v292 = vld [vmem:[%s0 + $0xa] sm:$0x1]
  %v293 = vld [vmem:[%s1 + $0x2] sm:$0x1]
  %v294 = vld [vmem:[%s1 + $0xa] sm:$0x1]
  %v295 = vld [vmem:[%s2 + $0x2] sm:$0x1]
  %v296 = vld [vmem:[%s2 + $0xa] sm:$0x1]
  %v299 = vrot.slane %v288, 7
  %v300 = vsel %vm171, %v299, %v287
  %v301 = vsel %vm38, %v300, 0
  %303 = vmatprep.subr.mxu0 0.0
  %304 = vmatpush1.msra.mxu0 %v28
  %305 = vmatprep.subr.mxu0 0.0
  %306 = vmatpush1.msra.mxu0 %v29
  %307 = vmatprep.subr.mxu0 0.0
  %308 = vmatpush1.msra.mxu0 %v30
  %309 = vmatprep.subr.mxu0 0.0
  %310 = vmatpush1.msra.mxu0 %v31
  %311 = vmatprep.subr.mxu0 0.0
  %312 = vmatpush1.msra.mxu0 0.0
  %313 = vmatprep.subr.mxu0 0.0
  %314 = vmatpush1.msra.mxu0 0.0
  %315 = vmatprep.subr.mxu0 0.0
  %316 = vmatpush1.msra.mxu0 0.0
  %317 = vmatprep.subr.mxu0 0.0
  %318 = vmatpush1.msra.mxu0 0.0
  %319 = vmatprep.subr.mxu0 0.0
  %320 = vmatpush1.msra.mxu0 0.0
  %321 = vmatprep.subr.mxu0 0.0
  %322 = vmatpush1.msra.mxu0 0.0
  %323 = vmatprep.subr.mxu0 0.0
  %324 = vmatpush1.msra.mxu0 0.0
  %325 = vmatprep.subr.mxu0 0.0
  %326 = vmatpush1.msra.mxu0 0.0
  %327 = vmatprep.subr.mxu0 0.0
  %328 = vmatpush1.msra.mxu0 0.0
  %329 = vmatprep.subr.mxu0 0.0
  %330 = vmatpush1.msra.mxu0 0.0
  %331 = vmatprep.subr.mxu0 0.0
  %332 = vmatpush1.msra.mxu0 0.0
  %333 = vmatprep.subr.mxu0 0.0
  %334 = vmatpush1.msra.mxu0 0.0
  %335 = vmatprep.subr.mxu0 0.0
  %336 = vmatpush1.msra.mxu0 0.0
  %337 = vmatprep.subr.mxu0 0.0
  %338 = vmatpush1.msra.mxu0 0.0
  %339 = vmatprep.subr.mxu0 0.0
  %340 = vmatpush1.msra.mxu0 0.0
  %341 = vmatprep.subr.mxu0 0.0
  %342 = vmatpush1.msra.mxu0 0.0
  %343 = vmatprep.subr.mxu0 0.0
  %344 = vmatpush1.msra.mxu0 0.0
  %345 = vmatprep.subr.mxu0 0.0
  %346 = vmatpush1.msra.mxu0 0.0
  %347 = vmatprep.subr.mxu0 0.0
  %348 = vmatpush1.msra.mxu0 0.0
  %349 = vmatprep.subr.mxu0 0.0
  %350 = vmatpush1.msra.mxu0 0.0
  %351 = vmatprep.subr.mxu0 0.0
  %352 = vmatpush1.msra.mxu0 0.0
  %353 = vmatprep.subr.mxu0 0.0
  %354 = vmatpush1.msra.mxu0 0.0
  %355 = vmatprep.subr.mxu0 0.0
  %356 = vmatpush1.msra.mxu0 0.0
  %357 = vmatprep.subr.mxu0 0.0
  %358 = vmatpush1.msra.mxu0 0.0
  %359 = vmatprep.subr.mxu0 0.0
  %360 = vmatpush1.msra.mxu0 0.0
  %361 = vmatprep.subr.mxu0 0.0
  %362 = vmatpush1.msra.mxu0 0.0
  %363 = vmatprep.subr.mxu0 0.0
  %364 = vmatpush1.msra.mxu0 0.0
  %365 = vmatprep.subr.mxu0 0.0
  %366 = vmatpush1.msra.mxu0 0.0
  %367 = vmatprep.mubr.f32.mxu0 0.0
  %368 = vmatmul.mubr.f32.gmra.mrb[0].mxu0 %v301
  %v369 = vpop.f32.mrb[0].mxu0
  %v370 = vadd.f32 0.0, %v369
  %v371 = vpop.f32.mrb[0].mxu0
  %372 = vdwg.mxu0
  %v374 = vrot.slane %v370, 1
  %v377 = vadd.f32 %v291, %v370
  %v378 = vadd.f32 %v292, %v374
  %v379 = vtanh.pop %v377
  %v380 = vtanh.pop %v378
  %v381 = vadd.f32 %v379, 1.0
  %v382 = vadd.f32 %v380, 1.0
  %383 = vrot.lane.b32.xlu0 %v370, 96
  %v384 = vpop.permute.xlu0 %383
  %385 = vrot.lane.b32.xlu0 %v374, 96
  %v386 = vpop.permute.xlu0 %385
  %v389 = vadd.f32 %v293, %v384
  %v390 = vadd.f32 %v294, %v386
  %v391 = vxor.u32 %v389, 2147483648
  %v392 = vxor.u32 %v390, 2147483648
  %v393 = vmul.f32 %v391, 1.442695
  %v394 = vpow.pop %v393
  %v395 = vmul.f32 %v392, 1.442695
  %v396 = vpow.pop %v395
  %v397 = vadd.f32 %v394, 1.0
  %v398 = vadd.f32 %v396, 1.0
  %v399 = vrcp.pop %v397
  %v400 = vmul.f32 1.0, %v399
  %v401 = vrcp.pop %v398
  %v402 = vmul.f32 1.0, %v401
  %v403 = vmul.f32 %v400, %v287
  %v404 = vmul.f32 %v402, %v288
  %v405 = vsub.f32 1.0, %v400
  %v406 = vsub.f32 1.0, %v402
  %v407 = vmul.f32 %v381, %v287
  %v408 = vmul.f32 %v382, %v288
  %v409 = vadd.f32 %v295, %v407
  %v410 = vadd.f32 %v296, %v408
  %v411 = vtanh.pop %v409
  %v412 = vtanh.pop %v410
  %v413 = vmul.f32 %v405, %v411
  %v414 = vmul.f32 %v406, %v412
  %v415 = vadd.f32 %v403, %v413
  %v416 = vadd.f32 %v404, %v414
  %417 = vst.msk [vmem:[%s5 + $0x2] sm:$0x1] %vm159, %v415
  %418 = vst.msk [vmem:[%s5 + $0xa] sm:$0x1] %vm159, %v416
  %v419 = vld [vmem:[%s0 + $0x3] sm:$0x1]
  %v420 = vld [vmem:[%s0 + $0xb] sm:$0x1]
  %v421 = vld [vmem:[%s1 + $0x3] sm:$0x1]
  %v422 = vld [vmem:[%s1 + $0xb] sm:$0x1]
  %v423 = vld [vmem:[%s2 + $0x3] sm:$0x1]
  %v424 = vld [vmem:[%s2 + $0xb] sm:$0x1]
  %v427 = vrot.slane %v416, 7
  %v428 = vsel %vm171, %v427, %v415
  %v429 = vsel %vm38, %v428, 0
  %431 = vmatprep.subr.mxu0 0.0
  %432 = vmatpush1.msra.mxu0 %v28
  %433 = vmatprep.subr.mxu0 0.0
  %434 = vmatpush1.msra.mxu0 %v29
  %435 = vmatprep.subr.mxu0 0.0
  %436 = vmatpush1.msra.mxu0 %v30
  %437 = vmatprep.subr.mxu0 0.0
  %438 = vmatpush1.msra.mxu0 %v31
  %439 = vmatprep.subr.mxu0 0.0
  %440 = vmatpush1.msra.mxu0 0.0
  %441 = vmatprep.subr.mxu0 0.0
  %442 = vmatpush1.msra.mxu0 0.0
  %443 = vmatprep.subr.mxu0 0.0
  %444 = vmatpush1.msra.mxu0 0.0
  %445 = vmatprep.subr.mxu0 0.0
  %446 = vmatpush1.msra.mxu0 0.0
  %447 = vmatprep.subr.mxu0 0.0
  %448 = vmatpush1.msra.mxu0 0.0
  %449 = vmatprep.subr.mxu0 0.0
  %450 = vmatpush1.msra.mxu0 0.0
  %451 = vmatprep.subr.mxu0 0.0
  %452 = vmatpush1.msra.mxu0 0.0
  %453 = vmatprep.subr.mxu0 0.0
  %454 = vmatpush1.msra.mxu0 0.0
  %455 = vmatprep.subr.mxu0 0.0
  %456 = vmatpush1.msra.mxu0 0.0
  %457 = vmatprep.subr.mxu0 0.0
  %458 = vmatpush1.msra.mxu0 0.0
  %459 = vmatprep.subr.mxu0 0.0
  %460 = vmatpush1.msra.mxu0 0.0
  %461 = vmatprep.subr.mxu0 0.0
  %462 = vmatpush1.msra.mxu0 0.0
  %463 = vmatprep.subr.mxu0 0.0
  %464 = vmatpush1.msra.mxu0 0.0
  %465 = vmatprep.subr.mxu0 0.0
  %466 = vmatpush1.msra.mxu0 0.0
  %467 = vmatprep.subr.mxu0 0.0
  %468 = vmatpush1.msra.mxu0 0.0
  %469 = vmatprep.subr.mxu0 0.0
  %470 = vmatpush1.msra.mxu0 0.0
  %471 = vmatprep.subr.mxu0 0.0
  %472 = vmatpush1.msra.mxu0 0.0
  %473 = vmatprep.subr.mxu0 0.0
  %474 = vmatpush1.msra.mxu0 0.0
  %475 = vmatprep.subr.mxu0 0.0
  %476 = vmatpush1.msra.mxu0 0.0
  %477 = vmatprep.subr.mxu0 0.0
  %478 = vmatpush1.msra.mxu0 0.0
  %479 = vmatprep.subr.mxu0 0.0
  %480 = vmatpush1.msra.mxu0 0.0
  %481 = vmatprep.subr.mxu0 0.0
  %482 = vmatpush1.msra.mxu0 0.0
  %483 = vmatprep.subr.mxu0 0.0
  %484 = vmatpush1.msra.mxu0 0.0
  %485 = vmatprep.subr.mxu0 0.0
  %486 = vmatpush1.msra.mxu0 0.0
  %487 = vmatprep.subr.mxu0 0.0
  %488 = vmatpush1.msra.mxu0 0.0
  %489 = vmatprep.subr.mxu0 0.0
  %490 = vmatpush1.msra.mxu0 0.0
  %491 = vmatprep.subr.mxu0 0.0
  %492 = vmatpush1.msra.mxu0 0.0
  %493 = vmatprep.subr.mxu0 0.0
  %494 = vmatpush1.msra.mxu0 0.0
  %495 = vmatprep.mubr.f32.mxu0 0.0
  %496 = vmatmul.mubr.f32.gmra.mrb[0].mxu0 %v429
  %v497 = vpop.f32.mrb[0].mxu0
  %v498 = vadd.f32 0.0, %v497
  %v499 = vpop.f32.mrb[0].mxu0
  %500 = vdwg.mxu0
  %v502 = vrot.slane %v498, 1
  %v505 = vadd.f32 %v419, %v498
  %v506 = vadd.f32 %v420, %v502
  %v507 = vtanh.pop %v505
  %v508 = vtanh.pop %v506
  %v509 = vadd.f32 %v507, 1.0
  %v510 = vadd.f32 %v508, 1.0
  %511 = vrot.lane.b32.xlu0 %v498, 96
  %v512 = vpop.permute.xlu0 %511
  %513 = vrot.lane.b32.xlu0 %v502, 96
  %v514 = vpop.permute.xlu0 %513
  %v517 = vadd.f32 %v421, %v512
  %v518 = vadd.f32 %v422, %v514
  %v519 = vxor.u32 %v517, 2147483648
  %v520 = vxor.u32 %v518, 2147483648
  %v521 = vmul.f32 %v519, 1.442695
  %v522 = vpow.pop %v521
  %v523 = vmul.f32 %v520, 1.442695
  %v524 = vpow.pop %v523
  %v525 = vadd.f32 %v522, 1.0
  %v526 = vadd.f32 %v524, 1.0
  %v527 = vrcp.pop %v525
  %v528 = vmul.f32 1.0, %v527
  %v529 = vrcp.pop %v526
  %v530 = vmul.f32 1.0, %v529
  %v531 = vmul.f32 %v528, %v415
  %v532 = vmul.f32 %v530, %v416
  %v533 = vsub.f32 1.0, %v528
  %v534 = vsub.f32 1.0, %v530
  %v535 = vmul.f32 %v509, %v415
  %v536 = vmul.f32 %v510, %v416
  %v537 = vadd.f32 %v423, %v535
  %v538 = vadd.f32 %v424, %v536
  %v539 = vtanh.pop %v537
  %v540 = vtanh.pop %v538
  %v541 = vmul.f32 %v533, %v539
  %v542 = vmul.f32 %v534, %v540
  %v543 = vadd.f32 %v531, %v541
  %v544 = vadd.f32 %v532, %v542
  %545 = vst.msk [vmem:[%s5 + $0x3] sm:$0x1] %vm159, %v543
  %546 = vst.msk [vmem:[%s5 + $0xb] sm:$0x1] %vm159, %v544
  %v547 = vld [vmem:[%s0 + $0x4] sm:$0x1]
  %v548 = vld [vmem:[%s0 + $0xc] sm:$0x1]
  %v549 = vld [vmem:[%s1 + $0x4] sm:$0x1]
  %v550 = vld [vmem:[%s1 + $0xc] sm:$0x1]
  %v551 = vld [vmem:[%s2 + $0x4] sm:$0x1]
  %v552 = vld [vmem:[%s2 + $0xc] sm:$0x1]
  %v555 = vrot.slane %v544, 7
  %v556 = vsel %vm171, %v555, %v543
  %v557 = vsel %vm38, %v556, 0
  %559 = vmatprep.subr.mxu0 0.0
  %560 = vmatpush1.msra.mxu0 %v28
  %561 = vmatprep.subr.mxu0 0.0
  %562 = vmatpush1.msra.mxu0 %v29
  %563 = vmatprep.subr.mxu0 0.0
  %564 = vmatpush1.msra.mxu0 %v30
  %565 = vmatprep.subr.mxu0 0.0
  %566 = vmatpush1.msra.mxu0 %v31
  %567 = vmatprep.subr.mxu0 0.0
  %568 = vmatpush1.msra.mxu0 0.0
  %569 = vmatprep.subr.mxu0 0.0
  %570 = vmatpush1.msra.mxu0 0.0
  %571 = vmatprep.subr.mxu0 0.0
  %572 = vmatpush1.msra.mxu0 0.0
  %573 = vmatprep.subr.mxu0 0.0
  %574 = vmatpush1.msra.mxu0 0.0
  %575 = vmatprep.subr.mxu0 0.0
  %576 = vmatpush1.msra.mxu0 0.0
  %577 = vmatprep.subr.mxu0 0.0
  %578 = vmatpush1.msra.mxu0 0.0
  %579 = vmatprep.subr.mxu0 0.0
  %580 = vmatpush1.msra.mxu0 0.0
  %581 = vmatprep.subr.mxu0 0.0
  %582 = vmatpush1.msra.mxu0 0.0
  %583 = vmatprep.subr.mxu0 0.0
  %584 = vmatpush1.msra.mxu0 0.0
  %585 = vmatprep.subr.mxu0 0.0
  %586 = vmatpush1.msra.mxu0 0.0
  %587 = vmatprep.subr.mxu0 0.0
  %588 = vmatpush1.msra.mxu0 0.0
  %589 = vmatprep.subr.mxu0 0.0
  %590 = vmatpush1.msra.mxu0 0.0
  %591 = vmatprep.subr.mxu0 0.0
  %592 = vmatpush1.msra.mxu0 0.0
  %593 = vmatprep.subr.mxu0 0.0
  %594 = vmatpush1.msra.mxu0 0.0
  %595 = vmatprep.subr.mxu0 0.0
  %596 = vmatpush1.msra.mxu0 0.0
  %597 = vmatprep.subr.mxu0 0.0
  %598 = vmatpush1.msra.mxu0 0.0
  %599 = vmatprep.subr.mxu0 0.0
  %600 = vmatpush1.msra.mxu0 0.0
  %601 = vmatprep.subr.mxu0 0.0
  %602 = vmatpush1.msra.mxu0 0.0
  %603 = vmatprep.subr.mxu0 0.0
  %604 = vmatpush1.msra.mxu0 0.0
  %605 = vmatprep.subr.mxu0 0.0
  %606 = vmatpush1.msra.mxu0 0.0
  %607 = vmatprep.subr.mxu0 0.0
  %608 = vmatpush1.msra.mxu0 0.0
  %609 = vmatprep.subr.mxu0 0.0
  %610 = vmatpush1.msra.mxu0 0.0
  %611 = vmatprep.subr.mxu0 0.0
  %612 = vmatpush1.msra.mxu0 0.0
  %613 = vmatprep.subr.mxu0 0.0
  %614 = vmatpush1.msra.mxu0 0.0
  %615 = vmatprep.subr.mxu0 0.0
  %616 = vmatpush1.msra.mxu0 0.0
  %617 = vmatprep.subr.mxu0 0.0
  %618 = vmatpush1.msra.mxu0 0.0
  %619 = vmatprep.subr.mxu0 0.0
  %620 = vmatpush1.msra.mxu0 0.0
  %621 = vmatprep.subr.mxu0 0.0
  %622 = vmatpush1.msra.mxu0 0.0
  %623 = vmatprep.mubr.f32.mxu0 0.0
  %624 = vmatmul.mubr.f32.gmra.mrb[0].mxu0 %v557
  %v625 = vpop.f32.mrb[0].mxu0
  %v626 = vadd.f32 0.0, %v625
  %v627 = vpop.f32.mrb[0].mxu0
  %628 = vdwg.mxu0
  %v630 = vrot.slane %v626, 1
  %v633 = vadd.f32 %v547, %v626
  %v634 = vadd.f32 %v548, %v630
  %v635 = vtanh.pop %v633
  %v636 = vtanh.pop %v634
  %v637 = vadd.f32 %v635, 1.0
  %v638 = vadd.f32 %v636, 1.0
  %639 = vrot.lane.b32.xlu0 %v626, 96
  %v640 = vpop.permute.xlu0 %639
  %641 = vrot.lane.b32.xlu0 %v630, 96
  %v642 = vpop.permute.xlu0 %641
  %v645 = vadd.f32 %v549, %v640
  %v646 = vadd.f32 %v550, %v642
  %v647 = vxor.u32 %v645, 2147483648
  %v648 = vxor.u32 %v646, 2147483648
  %v649 = vmul.f32 %v647, 1.442695
  %v650 = vpow.pop %v649
  %v651 = vmul.f32 %v648, 1.442695
  %v652 = vpow.pop %v651
  %v653 = vadd.f32 %v650, 1.0
  %v654 = vadd.f32 %v652, 1.0
  %v655 = vrcp.pop %v653
  %v656 = vmul.f32 1.0, %v655
  %v657 = vrcp.pop %v654
  %v658 = vmul.f32 1.0, %v657
  %v659 = vmul.f32 %v656, %v543
  %v660 = vmul.f32 %v658, %v544
  %v661 = vsub.f32 1.0, %v656
  %v662 = vsub.f32 1.0, %v658
  %v663 = vmul.f32 %v637, %v543
  %v664 = vmul.f32 %v638, %v544
  %v665 = vadd.f32 %v551, %v663
  %v666 = vadd.f32 %v552, %v664
  %v667 = vtanh.pop %v665
  %v668 = vtanh.pop %v666
  %v669 = vmul.f32 %v661, %v667
  %v670 = vmul.f32 %v662, %v668
  %v671 = vadd.f32 %v659, %v669
  %v672 = vadd.f32 %v660, %v670
  %673 = vst.msk [vmem:[%s5 + $0x4] sm:$0x1] %vm159, %v671
  %674 = vst.msk [vmem:[%s5 + $0xc] sm:$0x1] %vm159, %v672
  %v675 = vld [vmem:[%s0 + $0x5] sm:$0x1]
  %v676 = vld [vmem:[%s0 + $0xd] sm:$0x1]
  %v677 = vld [vmem:[%s1 + $0x5] sm:$0x1]
  %v678 = vld [vmem:[%s1 + $0xd] sm:$0x1]
  %v679 = vld [vmem:[%s2 + $0x5] sm:$0x1]
  %v680 = vld [vmem:[%s2 + $0xd] sm:$0x1]
  %v683 = vrot.slane %v672, 7
  %v684 = vsel %vm171, %v683, %v671
  %v685 = vsel %vm38, %v684, 0
  %687 = vmatprep.subr.mxu0 0.0
  %688 = vmatpush1.msra.mxu0 %v28
  %689 = vmatprep.subr.mxu0 0.0
  %690 = vmatpush1.msra.mxu0 %v29
  %691 = vmatprep.subr.mxu0 0.0
  %692 = vmatpush1.msra.mxu0 %v30
  %693 = vmatprep.subr.mxu0 0.0
  %694 = vmatpush1.msra.mxu0 %v31
  %695 = vmatprep.subr.mxu0 0.0
  %696 = vmatpush1.msra.mxu0 0.0
  %697 = vmatprep.subr.mxu0 0.0
  %698 = vmatpush1.msra.mxu0 0.0
  %699 = vmatprep.subr.mxu0 0.0
  %700 = vmatpush1.msra.mxu0 0.0
  %701 = vmatprep.subr.mxu0 0.0
  %702 = vmatpush1.msra.mxu0 0.0
  %703 = vmatprep.subr.mxu0 0.0
  %704 = vmatpush1.msra.mxu0 0.0
  %705 = vmatprep.subr.mxu0 0.0
  %706 = vmatpush1.msra.mxu0 0.0
  %707 = vmatprep.subr.mxu0 0.0
  %708 = vmatpush1.msra.mxu0 0.0
  %709 = vmatprep.subr.mxu0 0.0
  %710 = vmatpush1.msra.mxu0 0.0
  %711 = vmatprep.subr.mxu0 0.0
  %712 = vmatpush1.msra.mxu0 0.0
  %713 = vmatprep.subr.mxu0 0.0
  %714 = vmatpush1.msra.mxu0 0.0
  %715 = vmatprep.subr.mxu0 0.0
  %716 = vmatpush1.msra.mxu0 0.0
  %717 = vmatprep.subr.mxu0 0.0
  %718 = vmatpush1.msra.mxu0 0.0
  %719 = vmatprep.subr.mxu0 0.0
  %720 = vmatpush1.msra.mxu0 0.0
  %721 = vmatprep.subr.mxu0 0.0
  %722 = vmatpush1.msra.mxu0 0.0
  %723 = vmatprep.subr.mxu0 0.0
  %724 = vmatpush1.msra.mxu0 0.0
  %725 = vmatprep.subr.mxu0 0.0
  %726 = vmatpush1.msra.mxu0 0.0
  %727 = vmatprep.subr.mxu0 0.0
  %728 = vmatpush1.msra.mxu0 0.0
  %729 = vmatprep.subr.mxu0 0.0
  %730 = vmatpush1.msra.mxu0 0.0
  %731 = vmatprep.subr.mxu0 0.0
  %732 = vmatpush1.msra.mxu0 0.0
  %733 = vmatprep.subr.mxu0 0.0
  %734 = vmatpush1.msra.mxu0 0.0
  %735 = vmatprep.subr.mxu0 0.0
  %736 = vmatpush1.msra.mxu0 0.0
  %737 = vmatprep.subr.mxu0 0.0
  %738 = vmatpush1.msra.mxu0 0.0
  %739 = vmatprep.subr.mxu0 0.0
  %740 = vmatpush1.msra.mxu0 0.0
  %741 = vmatprep.subr.mxu0 0.0
  %742 = vmatpush1.msra.mxu0 0.0
  %743 = vmatprep.subr.mxu0 0.0
  %744 = vmatpush1.msra.mxu0 0.0
  %745 = vmatprep.subr.mxu0 0.0
  %746 = vmatpush1.msra.mxu0 0.0
  %747 = vmatprep.subr.mxu0 0.0
  %748 = vmatpush1.msra.mxu0 0.0
  %749 = vmatprep.subr.mxu0 0.0
  %750 = vmatpush1.msra.mxu0 0.0
  %751 = vmatprep.mubr.f32.mxu0 0.0
  %752 = vmatmul.mubr.f32.gmra.mrb[0].mxu0 %v685
  %v753 = vpop.f32.mrb[0].mxu0
  %v754 = vadd.f32 0.0, %v753
  %v755 = vpop.f32.mrb[0].mxu0
  %756 = vdwg.mxu0
  %v758 = vrot.slane %v754, 1
  %v761 = vadd.f32 %v675, %v754
  %v762 = vadd.f32 %v676, %v758
  %v763 = vtanh.pop %v761
  %v764 = vtanh.pop %v762
  %v765 = vadd.f32 %v763, 1.0
  %v766 = vadd.f32 %v764, 1.0
  %767 = vrot.lane.b32.xlu0 %v754, 96
  %v768 = vpop.permute.xlu0 %767
  %769 = vrot.lane.b32.xlu0 %v758, 96
  %v770 = vpop.permute.xlu0 %769
  %v773 = vadd.f32 %v677, %v768
  %v774 = vadd.f32 %v678, %v770
  %v775 = vxor.u32 %v773, 2147483648
  %v776 = vxor.u32 %v774, 2147483648
  %v777 = vmul.f32 %v775, 1.442695
  %v778 = vpow.pop %v777
  %v779 = vmul.f32 %v776, 1.442695
  %v780 = vpow.pop %v779
  %v781 = vadd.f32 %v778, 1.0
  %v782 = vadd.f32 %v780, 1.0
  %v783 = vrcp.pop %v781
  %v784 = vmul.f32 1.0, %v783
  %v785 = vrcp.pop %v782
  %v786 = vmul.f32 1.0, %v785
  %v787 = vmul.f32 %v784, %v671
  %v788 = vmul.f32 %v786, %v672
  %v789 = vsub.f32 1.0, %v784
  %v790 = vsub.f32 1.0, %v786
  %v791 = vmul.f32 %v765, %v671
  %v792 = vmul.f32 %v766, %v672
  %v793 = vadd.f32 %v679, %v791
  %v794 = vadd.f32 %v680, %v792
  %v795 = vtanh.pop %v793
  %v796 = vtanh.pop %v794
  %v797 = vmul.f32 %v789, %v795
  %v798 = vmul.f32 %v790, %v796
  %v799 = vadd.f32 %v787, %v797
  %v800 = vadd.f32 %v788, %v798
  %801 = vst.msk [vmem:[%s5 + $0x5] sm:$0x1] %vm159, %v799
  %802 = vst.msk [vmem:[%s5 + $0xd] sm:$0x1] %vm159, %v800
  %v803 = vld [vmem:[%s0 + $0x6] sm:$0x1]
  %v804 = vld [vmem:[%s0 + $0xe] sm:$0x1]
  %v805 = vld [vmem:[%s1 + $0x6] sm:$0x1]
  %v806 = vld [vmem:[%s1 + $0xe] sm:$0x1]
  %v807 = vld [vmem:[%s2 + $0x6] sm:$0x1]
  %v808 = vld [vmem:[%s2 + $0xe] sm:$0x1]
  %v811 = vrot.slane %v800, 7
  %v812 = vsel %vm171, %v811, %v799
  %v813 = vsel %vm38, %v812, 0
  %815 = vmatprep.subr.mxu0 0.0
  %816 = vmatpush1.msra.mxu0 %v28
  %817 = vmatprep.subr.mxu0 0.0
  %818 = vmatpush1.msra.mxu0 %v29
  %819 = vmatprep.subr.mxu0 0.0
  %820 = vmatpush1.msra.mxu0 %v30
  %821 = vmatprep.subr.mxu0 0.0
  %822 = vmatpush1.msra.mxu0 %v31
  %823 = vmatprep.subr.mxu0 0.0
  %824 = vmatpush1.msra.mxu0 0.0
  %825 = vmatprep.subr.mxu0 0.0
  %826 = vmatpush1.msra.mxu0 0.0
  %827 = vmatprep.subr.mxu0 0.0
  %828 = vmatpush1.msra.mxu0 0.0
  %829 = vmatprep.subr.mxu0 0.0
  %830 = vmatpush1.msra.mxu0 0.0
  %831 = vmatprep.subr.mxu0 0.0
  %832 = vmatpush1.msra.mxu0 0.0
  %833 = vmatprep.subr.mxu0 0.0
  %834 = vmatpush1.msra.mxu0 0.0
  %835 = vmatprep.subr.mxu0 0.0
  %836 = vmatpush1.msra.mxu0 0.0
  %837 = vmatprep.subr.mxu0 0.0
  %838 = vmatpush1.msra.mxu0 0.0
  %839 = vmatprep.subr.mxu0 0.0
  %840 = vmatpush1.msra.mxu0 0.0
  %841 = vmatprep.subr.mxu0 0.0
  %842 = vmatpush1.msra.mxu0 0.0
  %843 = vmatprep.subr.mxu0 0.0
  %844 = vmatpush1.msra.mxu0 0.0
  %845 = vmatprep.subr.mxu0 0.0
  %846 = vmatpush1.msra.mxu0 0.0
  %847 = vmatprep.subr.mxu0 0.0
  %848 = vmatpush1.msra.mxu0 0.0
  %849 = vmatprep.subr.mxu0 0.0
  %850 = vmatpush1.msra.mxu0 0.0
  %851 = vmatprep.subr.mxu0 0.0
  %852 = vmatpush1.msra.mxu0 0.0
  %853 = vmatprep.subr.mxu0 0.0
  %854 = vmatpush1.msra.mxu0 0.0
  %855 = vmatprep.subr.mxu0 0.0
  %856 = vmatpush1.msra.mxu0 0.0
  %857 = vmatprep.subr.mxu0 0.0
  %858 = vmatpush1.msra.mxu0 0.0
  %859 = vmatprep.subr.mxu0 0.0
  %860 = vmatpush1.msra.mxu0 0.0
  %861 = vmatprep.subr.mxu0 0.0
  %862 = vmatpush1.msra.mxu0 0.0
  %863 = vmatprep.subr.mxu0 0.0
  %864 = vmatpush1.msra.mxu0 0.0
  %865 = vmatprep.subr.mxu0 0.0
  %866 = vmatpush1.msra.mxu0 0.0
  %867 = vmatprep.subr.mxu0 0.0
  %868 = vmatpush1.msra.mxu0 0.0
  %869 = vmatprep.subr.mxu0 0.0
  %870 = vmatpush1.msra.mxu0 0.0
  %871 = vmatprep.subr.mxu0 0.0
  %872 = vmatpush1.msra.mxu0 0.0
  %873 = vmatprep.subr.mxu0 0.0
  %874 = vmatpush1.msra.mxu0 0.0
  %875 = vmatprep.subr.mxu0 0.0
  %876 = vmatpush1.msra.mxu0 0.0
  %877 = vmatprep.subr.mxu0 0.0
  %878 = vmatpush1.msra.mxu0 0.0
  %879 = vmatprep.mubr.f32.mxu0 0.0
  %880 = vmatmul.mubr.f32.gmra.mrb[0].mxu0 %v813
  %v881 = vpop.f32.mrb[0].mxu0
  %v882 = vadd.f32 0.0, %v881
  %v883 = vpop.f32.mrb[0].mxu0
  %884 = vdwg.mxu0
  %v886 = vrot.slane %v882, 1
  %v889 = vadd.f32 %v803, %v882
  %v890 = vadd.f32 %v804, %v886
  %v891 = vtanh.pop %v889
  %v892 = vtanh.pop %v890
  %v893 = vadd.f32 %v891, 1.0
  %v894 = vadd.f32 %v892, 1.0
  %895 = vrot.lane.b32.xlu0 %v882, 96
  %v896 = vpop.permute.xlu0 %895
  %897 = vrot.lane.b32.xlu0 %v886, 96
  %v898 = vpop.permute.xlu0 %897
  %v901 = vadd.f32 %v805, %v896
  %v902 = vadd.f32 %v806, %v898
  %v903 = vxor.u32 %v901, 2147483648
  %v904 = vxor.u32 %v902, 2147483648
  %v905 = vmul.f32 %v903, 1.442695
  %v906 = vpow.pop %v905
  %v907 = vmul.f32 %v904, 1.442695
  %v908 = vpow.pop %v907
  %v909 = vadd.f32 %v906, 1.0
  %v910 = vadd.f32 %v908, 1.0
  %v911 = vrcp.pop %v909
  %v912 = vmul.f32 1.0, %v911
  %v913 = vrcp.pop %v910
  %v914 = vmul.f32 1.0, %v913
  %v915 = vmul.f32 %v912, %v799
  %v916 = vmul.f32 %v914, %v800
  %v917 = vsub.f32 1.0, %v912
  %v918 = vsub.f32 1.0, %v914
  %v919 = vmul.f32 %v893, %v799
  %v920 = vmul.f32 %v894, %v800
  %v921 = vadd.f32 %v807, %v919
  %v922 = vadd.f32 %v808, %v920
  %v923 = vtanh.pop %v921
  %v924 = vtanh.pop %v922
  %v925 = vmul.f32 %v917, %v923
  %v926 = vmul.f32 %v918, %v924
  %v927 = vadd.f32 %v915, %v925
  %v928 = vadd.f32 %v916, %v926
  %929 = vst.msk [vmem:[%s5 + $0x6] sm:$0x1] %vm159, %v927
  %930 = vst.msk [vmem:[%s5 + $0xe] sm:$0x1] %vm159, %v928
  %v931 = vld [vmem:[%s0 + $0x7] sm:$0x1]
  %v932 = vld [vmem:[%s0 + $0xf] sm:$0x1]
  %v933 = vld [vmem:[%s1 + $0x7] sm:$0x1]
  %v934 = vld [vmem:[%s1 + $0xf] sm:$0x1]
  %v935 = vld [vmem:[%s2 + $0x7] sm:$0x1]
  %v936 = vld [vmem:[%s2 + $0xf] sm:$0x1]
  %v939 = vrot.slane %v928, 7
  %v940 = vsel %vm171, %v939, %v927
  %v941 = vsel %vm38, %v940, 0
  %943 = vmatprep.subr.mxu0 0.0
  %944 = vmatpush1.msra.mxu0 %v28
  %945 = vmatprep.subr.mxu0 0.0
  %946 = vmatpush1.msra.mxu0 %v29
  %947 = vmatprep.subr.mxu0 0.0
  %948 = vmatpush1.msra.mxu0 %v30
  %949 = vmatprep.subr.mxu0 0.0
  %950 = vmatpush1.msra.mxu0 %v31
  %951 = vmatprep.subr.mxu0 0.0
  %952 = vmatpush1.msra.mxu0 0.0
  %953 = vmatprep.subr.mxu0 0.0
  %954 = vmatpush1.msra.mxu0 0.0
  %955 = vmatprep.subr.mxu0 0.0
  %956 = vmatpush1.msra.mxu0 0.0
  %957 = vmatprep.subr.mxu0 0.0
  %958 = vmatpush1.msra.mxu0 0.0
  %959 = vmatprep.subr.mxu0 0.0
  %960 = vmatpush1.msra.mxu0 0.0
  %961 = vmatprep.subr.mxu0 0.0
  %962 = vmatpush1.msra.mxu0 0.0
  %963 = vmatprep.subr.mxu0 0.0
  %964 = vmatpush1.msra.mxu0 0.0
  %965 = vmatprep.subr.mxu0 0.0
  %966 = vmatpush1.msra.mxu0 0.0
  %967 = vmatprep.subr.mxu0 0.0
  %968 = vmatpush1.msra.mxu0 0.0
  %969 = vmatprep.subr.mxu0 0.0
  %970 = vmatpush1.msra.mxu0 0.0
  %971 = vmatprep.subr.mxu0 0.0
  %972 = vmatpush1.msra.mxu0 0.0
  %973 = vmatprep.subr.mxu0 0.0
  %974 = vmatpush1.msra.mxu0 0.0
  %975 = vmatprep.subr.mxu0 0.0
  %976 = vmatpush1.msra.mxu0 0.0
  %977 = vmatprep.subr.mxu0 0.0
  %978 = vmatpush1.msra.mxu0 0.0
  %979 = vmatprep.subr.mxu0 0.0
  %980 = vmatpush1.msra.mxu0 0.0
  %981 = vmatprep.subr.mxu0 0.0
  %982 = vmatpush1.msra.mxu0 0.0
  %983 = vmatprep.subr.mxu0 0.0
  %984 = vmatpush1.msra.mxu0 0.0
  %985 = vmatprep.subr.mxu0 0.0
  %986 = vmatpush1.msra.mxu0 0.0
  %987 = vmatprep.subr.mxu0 0.0
  %988 = vmatpush1.msra.mxu0 0.0
  %989 = vmatprep.subr.mxu0 0.0
  %990 = vmatpush1.msra.mxu0 0.0
  %991 = vmatprep.subr.mxu0 0.0
  %992 = vmatpush1.msra.mxu0 0.0
  %993 = vmatprep.subr.mxu0 0.0
  %994 = vmatpush1.msra.mxu0 0.0
  %995 = vmatprep.subr.mxu0 0.0
  %996 = vmatpush1.msra.mxu0 0.0
  %997 = vmatprep.subr.mxu0 0.0
  %998 = vmatpush1.msra.mxu0 0.0
  %999 = vmatprep.subr.mxu0 0.0
  %1000 = vmatpush1.msra.mxu0 0.0
  %1001 = vmatprep.subr.mxu0 0.0
  %1002 = vmatpush1.msra.mxu0 0.0
  %1003 = vmatprep.subr.mxu0 0.0
  %1004 = vmatpush1.msra.mxu0 0.0
  %1005 = vmatprep.subr.mxu0 0.0
  %1006 = vmatpush1.msra.mxu0 0.0
  %1007 = vmatprep.mubr.f32.mxu0 0.0
  %1008 = vmatmul.mubr.f32.gmra.mrb[0].mxu0 %v941
  %v1009 = vpop.f32.mrb[0].mxu0
  %v1010 = vadd.f32 0.0, %v1009
  %v1011 = vpop.f32.mrb[0].mxu0
  %1012 = vdwg.mxu0
  %v1014 = vrot.slane %v1010, 1
  %v1017 = vadd.f32 %v931, %v1010
  %v1018 = vadd.f32 %v932, %v1014
  %v1019 = vtanh.pop %v1017
  %v1020 = vtanh.pop %v1018
  %v1021 = vadd.f32 %v1019, 1.0
  %v1022 = vadd.f32 %v1020, 1.0
  %1023 = vrot.lane.b32.xlu0 %v1010, 96
  %v1024 = vpop.permute.xlu0 %1023
  %1025 = vrot.lane.b32.xlu0 %v1014, 96
  %v1026 = vpop.permute.xlu0 %1025
  %v1029 = vadd.f32 %v933, %v1024
  %v1030 = vadd.f32 %v934, %v1026
  %v1031 = vxor.u32 %v1029, 2147483648
  %v1032 = vxor.u32 %v1030, 2147483648
  %v1033 = vmul.f32 %v1031, 1.442695
  %v1034 = vpow.pop %v1033
  %v1035 = vmul.f32 %v1032, 1.442695
  %v1036 = vpow.pop %v1035
  %v1037 = vadd.f32 %v1034, 1.0
  %v1038 = vadd.f32 %v1036, 1.0
  %v1039 = vrcp.pop %v1037
  %v1040 = vmul.f32 1.0, %v1039
  %v1041 = vrcp.pop %v1038
  %v1042 = vmul.f32 1.0, %v1041
  %v1043 = vmul.f32 %v1040, %v927
  %v1044 = vmul.f32 %v1042, %v928
  %v1045 = vsub.f32 1.0, %v1040
  %v1046 = vsub.f32 1.0, %v1042
  %v1047 = vmul.f32 %v1021, %v927
  %v1048 = vmul.f32 %v1022, %v928
  %v1049 = vadd.f32 %v935, %v1047
  %v1050 = vadd.f32 %v936, %v1048
  %v1051 = vtanh.pop %v1049
  %v1052 = vtanh.pop %v1050
  %v1053 = vmul.f32 %v1045, %v1051
  %v1054 = vmul.f32 %v1046, %v1052
  %v1055 = vadd.f32 %v1043, %v1053
  %v1056 = vadd.f32 %v1044, %v1054
  %1057 = vst.msk [vmem:[%s5 + $0x7] sm:$0x1] %vm159, %v1055
  %1058 = vst.msk [vmem:[%s5 + $0xf] sm:$0x1] %vm159, %v1056
  %v1061 = vrot.slane %v1056, 7
  %v1062 = vsel %vm171, %v1061, %v1055
  %vm1064 = vcmask 254976
  %1065 = vst.msk [vmem:[#allocation2] sm:$0x3] %vm1064, %v1062
  // Predicated region
  $region26: #{nbrc_forward.1} parent=0 // pred_check
    _
  $region27: #{nbrc_forward.1} parent=0 // pred_check_branch
    %1067 = sbr.rel (0) target = $region29
  $region28: #{nbrc_forward.1} parent=0 // pred_region
    _
  $region29: #{nbrc_forward.1} parent=0 // pred_fallthru
    _
  // Predicated region
  $region30: #{nbrc_forward.1} parent=0 // pred_check
    _
  $region31: #{nbrc_forward.1} parent=0 // pred_check_branch
    %1069 = sbr.rel (0) target = $region33
  $region32: #{nbrc_forward.1} parent=0 // pred_region
    _
  $region33: #{nbrc_forward.1} parent=0 // pred_fallthru
    _

</llo_original>
